<compile_context>
chip_gen: v5e
topology: v5e:2x2
jax: 0.10.0
libtpu: 0.0.40
codegen_flags: <defaults>
</compile_context>

<pallas_src>
import math
import functools

import jax
import jax.numpy as jnp
from jax.experimental import pallas as pl
from jax.experimental.pallas import tpu as pltpu


# ----------------------------------------------------------------------------
# In-kernel helpers
# ----------------------------------------------------------------------------
def _layernorm(v, g, b, eps=1e-5):
    mu = jnp.mean(v, axis=-1, keepdims=True)
    var = jnp.mean((v - mu) ** 2, axis=-1, keepdims=True)
    return (v - mu) * jax.lax.rsqrt(var + eps) * g + b


def _softmax_last(s):
    s = s - jnp.max(s, axis=-1, keepdims=True)
    e = jnp.exp(s)
    denom = jnp.sum(e, axis=-1, keepdims=True)
    return e * pl.reciprocal(denom, approx=True)


# ----------------------------------------------------------------------------
# Fused encoder kernel: one grid step = (batch element b, layer l)
# ----------------------------------------------------------------------------
def encoder_kernel(
    x_ref,
    ln1g_ref, ln1b_ref,
    wqkv_ref, bqkv_ref,
    wo_ref, bo_ref,
    ln2g_ref, ln2b_ref,
    w1_ref, b1_ref,
    w2_ref, b2_ref,
    lnfg_ref, lnfb_ref,
    o_ref,
    x_scratch,
    *, num_heads, head_dim, num_layers,
):
    l = pl.program_id(1)

    # Initialize the residual-stream carry from the input at the first layer.
    @pl.when(l == 0)
    def _():
        x_scratch[...] = x_ref[0]

    x = x_scratch[...]                                   # (S, D)
    H, hd = num_heads, head_dim

    # ---- LayerNorm 1 ----
    y = _layernorm(x, ln1g_ref[0], ln1b_ref[0])          # (S, D)

    # ---- Multi-head self-attention: all heads batched in 3-D einsums ----
    # (1/sqrt(hd) is pre-folded into the Q weights & bias on the host.)
    qkv = jnp.einsum('sd,hde->hse', y, wqkv_ref[0],
                     preferred_element_type=jnp.float32) + bqkv_ref[0]   # (H, S, 3*hd)
    q = qkv[:, :, 0 * hd:1 * hd]                         # (H, S, hd)  (pre-scaled)
    k = qkv[:, :, 1 * hd:2 * hd]
    v = qkv[:, :, 2 * hd:3 * hd]

    s = jnp.einsum('hqe,hke->hqk', q, k,
                   preferred_element_type=jnp.float32)   # (H, S, S)
    p = _softmax_last(s)
    ctx = jnp.einsum('hqk,hke->hqe', p, v,
                     preferred_element_type=jnp.float32) # (H, S, hd)

    # Out-projection applied per head and summed over heads == concat + matmul.
    proj = jnp.einsum('hqe,hef->hqf', ctx, wo_ref[0],
                      preferred_element_type=jnp.float32)  # (H, S, D)
    attn = jnp.sum(proj, axis=0) + bo_ref[0]             # (S, D)

    # residual 1 (DropPath / attention dropout are identity at inference)
    x1 = x + attn

    # ---- LayerNorm 2 + FeedForward ----
    y2 = _layernorm(x1, ln2g_ref[0], ln2b_ref[0])
    h1 = jnp.dot(y2, w1_ref[0], preferred_element_type=jnp.float32) + b1_ref[0]
    # TODO(synk): FeedForward class not given in the source; assuming
    # Linear -> GELU (tanh approx) -> Linear.
    h1 = jax.nn.gelu(h1)
    h2 = jnp.dot(h1, w2_ref[0], preferred_element_type=jnp.float32) + b2_ref[0]

    # residual 2, carried to the next layer step
    x_new = x1 + h2
    x_scratch[...] = x_new

    # ---- Final LayerNorm fused into the last layer step ----
    @pl.when(l == num_layers - 1)
    def _():
        o_ref[0] = _layernorm(x_new, lnfg_ref[...], lnfb_ref[...]).astype(o_ref.dtype)


# ----------------------------------------------------------------------------
# Wrapper
# ----------------------------------------------------------------------------
def encoder_forward(x, params, num_heads):
    B, S, D = x.shape
    L = params["wqkv"].shape[0]
    hd = D // num_heads

    def wspec(arr):
        nd = arr.ndim
        return pl.BlockSpec((1,) + arr.shape[1:],
                            lambda b, l, _nd=nd: (l,) + (0,) * (_nd - 1))

    in_specs = [
        pl.BlockSpec((1, S, D), lambda b, l: (b, 0, 0)),     # x (fetched once per b)
        wspec(params["ln1_g"]), wspec(params["ln1_b"]),
        wspec(params["wqkv"]), wspec(params["bqkv"]),
        wspec(params["wo"]), wspec(params["bo"]),
        wspec(params["ln2_g"]), wspec(params["ln2_b"]),
        wspec(params["w1"]), wspec(params["b1"]),
        wspec(params["w2"]), wspec(params["b2"]),
        pl.BlockSpec((1, D), lambda b, l: (0, 0)),           # final LN gamma
        pl.BlockSpec((1, D), lambda b, l: (0, 0)),           # final LN beta
    ]

    kernel = functools.partial(
        encoder_kernel, num_heads=num_heads, head_dim=hd, num_layers=L)

    return pl.pallas_call(
        kernel,
        out_shape=jax.ShapeDtypeStruct((B, S, D), x.dtype),
        grid=(B, L),
        in_specs=in_specs,
        out_specs=pl.BlockSpec((1, S, D), lambda b, l: (b, 0, 0)),
        scratch_shapes=[pltpu.VMEM((S, D), jnp.float32)],
        compiler_params=pltpu.CompilerParams(
            dimension_semantics=("parallel", "arbitrary")),
    )(
        x,
        params["ln1_g"], params["ln1_b"],
        params["wqkv"], params["bqkv"],
        params["wo"], params["bo"],
        params["ln2_g"], params["ln2_b"],
        params["w1"], params["b1"],
        params["w2"], params["b2"],
        params["lnf_g"], params["lnf_b"],
    )


# ----------------------------------------------------------------------------
# Parameter construction (PyTorch-style layout) + kernel-layout preparation
# ----------------------------------------------------------------------------
def make_params(key, layers, D, dff):
    """Per-layer params, weights stored transposed so y @ W + b applies them."""
    layer_params = []
    for i in range(layers):
        keys = jax.random.split(jax.random.fold_in(key, i), 8)
        p = {
            "ln1_g": jnp.ones((D,), jnp.float32),
            "ln1_b": jnp.zeros((D,), jnp.float32),
            "ln2_g": jnp.ones((D,), jnp.float32),
            "ln2_b": jnp.zeros((D,), jnp.float32),
            "wqkv": 0.05 * jax.random.normal(keys[0], (D, 3 * D), jnp.float32),
            "bqkv": 0.05 * jax.random.normal(keys[1], (3 * D,), jnp.float32),
            "wo": 0.05 * jax.random.normal(keys[2], (D, D), jnp.float32),
            "bo": 0.05 * jax.random.normal(keys[3], (D,), jnp.float32),
            "w1": 0.05 * jax.random.normal(keys[4], (D, dff), jnp.float32),
            "b1": 0.05 * jax.random.normal(keys[5], (dff,), jnp.float32),
            "w2": 0.05 * jax.random.normal(keys[6], (dff, D), jnp.float32),
            "b2": 0.05 * jax.random.normal(keys[7], (D,), jnp.float32),
        }
        layer_params.append(p)
    final_g = jnp.ones((D,), jnp.float32)
    final_b = jnp.zeros((D,), jnp.float32)
    return layer_params, final_g, final_b


def prepare_params(layer_params, final_g, final_b, num_heads):
    """Fold 1/sqrt(hd) into Q, split heads, and stack all layers on a leading axis."""
    D = layer_params[0]["wo"].shape[0]
    H = num_heads
    hd = D // H
    scale = 1.0 / math.sqrt(hd)

    def per_head_in_proj(wqkv, bqkv):
        wq, wk, wv = wqkv[:, :D], wqkv[:, D:2 * D], wqkv[:, 2 * D:]
        bq, bk, bv = bqkv[:D], bqkv[D:2 * D], bqkv[2 * D:]
        split_w = lambda w: w.reshape(D, H, hd).transpose(1, 0, 2)   # (H, D, hd)
        split_b = lambda b: b.reshape(H, 1, hd)                      # (H, 1, hd)
        w_h = jnp.concatenate([split_w(wq) * scale, split_w(wk), split_w(wv)], axis=-1)
        b_h = jnp.concatenate([split_b(bq) * scale, split_b(bk), split_b(bv)], axis=-1)
        return w_h, b_h                                              # (H,D,3hd), (H,1,3hd)

    keys = ["ln1_g", "ln1_b", "wqkv", "bqkv", "wo", "bo",
            "ln2_g", "ln2_b", "w1", "b1", "w2", "b2"]
    stacked = {k: [] for k in keys}
    for p in layer_params:
        w_h, b_h = per_head_in_proj(p["wqkv"], p["bqkv"])
        stacked["ln1_g"].append(p["ln1_g"][None, :])
        stacked["ln1_b"].append(p["ln1_b"][None, :])
        stacked["wqkv"].append(w_h)
        stacked["bqkv"].append(b_h)
        stacked["wo"].append(p["wo"].reshape(H, hd, D))
        stacked["bo"].append(p["bo"][None, :])
        stacked["ln2_g"].append(p["ln2_g"][None, :])
        stacked["ln2_b"].append(p["ln2_b"][None, :])
        stacked["w1"].append(p["w1"])
        stacked["b1"].append(p["b1"][None, :])
        stacked["w2"].append(p["w2"])
        stacked["b2"].append(p["b2"][None, :])
    params = {k: jnp.stack(v, axis=0) for k, v in stacked.items()}
    params["lnf_g"] = final_g[None, :]   # (1, D)
    params["lnf_b"] = final_b[None, :]
    return params


# ----------------------------------------------------------------------------
# Pure-JAX reference (mirrors the PyTorch module in eval mode)
# ----------------------------------------------------------------------------
def _ln_ref(x, g, b, eps=1e-5):
    mu = jnp.mean(x, axis=-1, keepdims=True)
    var = jnp.mean((x - mu) ** 2, axis=-1, keepdims=True)
    return (x - mu) * jax.lax.rsqrt(var + eps) * g + b


def encoder_reference(x, layer_params, final_g, final_b, num_heads):
    B, S, D = x.shape
    H = num_heads
    hd = D // H
    scale = 1.0 / math.sqrt(hd)
    for p in layer_params:
        y = _ln_ref(x, p["ln1_g"], p["ln1_b"])
        qkv = y @ p["wqkv"] + p["bqkv"]
        q, k, v = qkv[..., :D], qkv[..., D:2 * D], qkv[..., 2 * D:]
        q = q.reshape(B, S, H, hd).transpose(0, 2, 1, 3) * scale
        k = k.reshape(B, S, H, hd).transpose(0, 2, 1, 3)
        v = v.reshape(B, S, H, hd).transpose(0, 2, 1, 3)
        s = jnp.einsum('bhqe,bhke->bhqk', q, k)
        pattn = jax.nn.softmax(s, axis=-1)
        ctx = jnp.einsum('bhqk,bhke->bhqe', pattn, v)
        ctx = ctx.transpose(0, 2, 1, 3).reshape(B, S, D)
        x = x + (ctx @ p["wo"] + p["bo"])
        y2 = _ln_ref(x, p["ln2_g"], p["ln2_b"])
        h = jax.nn.gelu(y2 @ p["w1"] + p["b1"])
        x = x + (h @ p["w2"] + p["b2"])
    return _ln_ref(x, final_g, final_b)


# ----------------------------------------------------------------------------
if __name__ == "__main__":
    B, S, D = 2, 8, 32
    heads, dff, layers = 4, 64, 2

    key = jax.random.PRNGKey(0)
    x = jax.random.normal(jax.random.fold_in(key, 999), (B, S, D), jnp.float32)
    layer_params, fg, fb = make_params(key, layers, D, dff)

    params = prepare_params(layer_params, fg, fb, heads)
    out = encoder_forward(x, params, num_heads=heads)
    out = jax.block_until_ready(out)
    assert out.shape == (B, S, D)

    ref = jax.block_until_ready(encoder_reference(x, layer_params, fg, fb, heads))
    max_err = float(jnp.max(jnp.abs(out - ref)))
    assert max_err < 3e-2, f"mismatch vs reference: max abs err = {max_err}"

    print("KERNEL_OK")
</pallas_src>

<mosaic_0001>
module attributes {stable_mosaic.version = 11 : i64} {
  func.func @encoder_kernel(%arg0: i32, %arg1: i32, %arg2: memref<1x8x32xf32, #tpu.memory_space<vmem>>, %arg3: memref<1x1x32xf32, #tpu.memory_space<vmem>>, %arg4: memref<1x1x32xf32, #tpu.memory_space<vmem>>, %arg5: memref<1x4x32x24xf32, #tpu.memory_space<vmem>>, %arg6: memref<1x4x1x24xf32, #tpu.memory_space<vmem>>, %arg7: memref<1x4x8x32xf32, #tpu.memory_space<vmem>>, %arg8: memref<1x1x32xf32, #tpu.memory_space<vmem>>, %arg9: memref<1x1x32xf32, #tpu.memory_space<vmem>>, %arg10: memref<1x1x32xf32, #tpu.memory_space<vmem>>, %arg11: memref<1x32x64xf32, #tpu.memory_space<vmem>>, %arg12: memref<1x1x64xf32, #tpu.memory_space<vmem>>, %arg13: memref<1x64x32xf32, #tpu.memory_space<vmem>>, %arg14: memref<1x1x32xf32, #tpu.memory_space<vmem>>, %arg15: memref<1x32xf32, #tpu.memory_space<vmem>>, %arg16: memref<1x32xf32, #tpu.memory_space<vmem>>, %arg17: memref<1x8x32xf32, #tpu.memory_space<vmem>>, %arg18: memref<8x32xf32, #tpu.memory_space<vmem>>) attributes {dimension_semantics = [#tpu.dimension_semantics<parallel>, #tpu.dimension_semantics<arbitrary>], iteration_bounds = array<i64: 2, 2>, scalar_prefetch = 0 : i64, scratch_operands = 1 : i64, tpu.core_type = #tpu.core_type<tc>, window_params = [{transform_indices = @transform_0, window_bounds = array<i64: 1, 8, 32>}, {transform_indices = @transform_1, window_bounds = array<i64: 1, 1, 32>}, {transform_indices = @transform_2, window_bounds = array<i64: 1, 1, 32>}, {transform_indices = @transform_3, window_bounds = array<i64: 1, 4, 32, 24>}, {transform_indices = @transform_4, window_bounds = array<i64: 1, 4, 1, 24>}, {transform_indices = @transform_5, window_bounds = array<i64: 1, 4, 8, 32>}, {transform_indices = @transform_6, window_bounds = array<i64: 1, 1, 32>}, {transform_indices = @transform_7, window_bounds = array<i64: 1, 1, 32>}, {transform_indices = @transform_8, window_bounds = array<i64: 1, 1, 32>}, {transform_indices = @transform_9, window_bounds = array<i64: 1, 32, 64>}, {transform_indices = @transform_10, window_bounds = array<i64: 1, 1, 64>}, {transform_indices = @transform_11, window_bounds = array<i64: 1, 64, 32>}, {transform_indices = @transform_12, window_bounds = array<i64: 1, 1, 32>}, {pipeline_mode = #tpu.pipeline_mode<synchronous>, transform_indices = @transform_13, window_bounds = array<i64: 1, 32>}, {pipeline_mode = #tpu.pipeline_mode<synchronous>, transform_indices = @transform_14, window_bounds = array<i64: 1, 32>}, {transform_indices = @transform_15, window_bounds = array<i64: 1, 8, 32>}]} {
    %c0_i32 = arith.constant 0 : i32
    %0 = arith.cmpi eq, %arg1, %c0_i32 : i32
    %1 = arith.extui %0 : i1 to i32
    %c0_i32_0 = arith.constant 0 : i32
    %2 = arith.cmpi ne, %1, %c0_i32_0 : i32
    scf.if %2 {
      %c0_66 = arith.constant 0 : index
      %c0_67 = arith.constant 0 : index
      %c0_68 = arith.constant 0 : index
      %120 = vector.load %arg2[%c0_66, %c0_67, %c0_68] : memref<1x8x32xf32, #tpu.memory_space<vmem>>, vector<1x8x32xf32>
      %121 = vector.shape_cast %120 : vector<1x8x32xf32> to vector<8x32xf32>
      %c0_69 = arith.constant 0 : index
      %c0_70 = arith.constant 0 : index
      %122 = vector.load %arg18[%c0_69, %c0_70] : memref<8x32xf32, #tpu.memory_space<vmem>>, vector<8x32xf32>
      tpu.vector_store %arg18[%c0_69, %c0_70], %121 {strides = array<i32>} : memref<8x32xf32, #tpu.memory_space<vmem>>, vector<8x32xf32>,
    } else {
    }
    %c0 = arith.constant 0 : index
    %c0_1 = arith.constant 0 : index
    %3 = vector.load %arg18[%c0, %c0_1] : memref<8x32xf32, #tpu.memory_space<vmem>>, vector<8x32xf32>
    %c0_2 = arith.constant 0 : index
    %c0_3 = arith.constant 0 : index
    %c0_4 = arith.constant 0 : index
    %4 = vector.load %arg3[%c0_2, %c0_3, %c0_4] : memref<1x1x32xf32, #tpu.memory_space<vmem>>, vector<1x1x32xf32>
    %5 = vector.shape_cast %4 : vector<1x1x32xf32> to vector<1x32xf32>
    %c0_5 = arith.constant 0 : index
    %c0_6 = arith.constant 0 : index
    %c0_7 = arith.constant 0 : index
    %6 = vector.load %arg4[%c0_5, %c0_6, %c0_7] : memref<1x1x32xf32, #tpu.memory_space<vmem>>, vector<1x1x32xf32>
    %7 = vector.shape_cast %6 : vector<1x1x32xf32> to vector<1x32xf32>
    %cst = arith.constant dense<0.000000e+00> : vector<8xf32>
    %8 = vector.multi_reduction <add>, %3, %cst [1] : vector<8x32xf32> to vector<8xf32>
    %9 = vector.shape_cast %8 : vector<8xf32> to vector<8x1xf32>
    %cst_8 = arith.constant 3.200000e+01 : f32
    %10 = vector.broadcast %cst_8 : f32 to vector<8x1xf32>
    %11 = arith.divf %9, %10 : vector<8x1xf32>
    %12 = vector.broadcast %11 : vector<8x1xf32> to vector<8x32xf32>
    %13 = arith.subf %3, %12 : vector<8x32xf32>
    %14 = arith.mulf %13, %13 : vector<8x32xf32>
    %cst_9 = arith.constant dense<0.000000e+00> : vector<8xf32>
    %15 = vector.multi_reduction <add>, %14, %cst_9 [1] : vector<8x32xf32> to vector<8xf32>
    %16 = vector.shape_cast %15 : vector<8xf32> to vector<8x1xf32>
    %cst_10 = arith.constant 3.200000e+01 : f32
    %17 = vector.broadcast %cst_10 : f32 to vector<8x1xf32>
    %18 = arith.divf %16, %17 : vector<8x1xf32>
    %19 = vector.broadcast %11 : vector<8x1xf32> to vector<8x32xf32>
    %20 = arith.subf %3, %19 : vector<8x32xf32>
    %cst_11 = arith.constant 9.99999974E-6 : f32
    %21 = vector.broadcast %cst_11 : f32 to vector<8x1xf32>
    %22 = arith.addf %18, %21 : vector<8x1xf32>
    %23 = math.rsqrt %22 : vector<8x1xf32>
    %24 = vector.broadcast %23 : vector<8x1xf32> to vector<8x32xf32>
    %25 = arith.mulf %20, %24 : vector<8x32xf32>
    %26 = vector.broadcast %5 : vector<1x32xf32> to vector<8x32xf32>
    %27 = arith.mulf %25, %26 : vector<8x32xf32>
    %28 = vector.broadcast %7 : vector<1x32xf32> to vector<8x32xf32>
    %29 = arith.addf %27, %28 : vector<8x32xf32>
    %c0_12 = arith.constant 0 : index
    %c0_13 = arith.constant 0 : index
    %c0_14 = arith.constant 0 : index
    %c0_15 = arith.constant 0 : index
    %30 = vector.load %arg5[%c0_12, %c0_13, %c0_14, %c0_15] : memref<1x4x32x24xf32, #tpu.memory_space<vmem>>, vector<1x4x32x24xf32>
    %31 = vector.shape_cast %30 : vector<1x4x32x24xf32> to vector<4x32x24xf32>
    "tpu.trace_start"() <{level = 10 : i32, message = "sd,hde->hse"}> : () -> ()
    %cst_16 = arith.constant dense<0.000000e+00> : vector<4x24x8xf32>
    %32 = tpu.matmul %31, %29, %cst_16 {dimension_numbers = #tpu.dot_dimension_numbers<[1], [1], [0, 2], [0], [0, 0, 0, 2, 1, 0], [], []>} : vector<4x32x24xf32>, vector<8x32xf32>, vector<4x24x8xf32> -> vector<4x24x8xf32>
    %33 = tpu.transpose %32, [0, 2, 1] : vector<4x24x8xf32> -> vector<4x8x24xf32>
    "tpu.trace_stop"() : () -> ()
    %c0_17 = arith.constant 0 : index
    %c0_18 = arith.constant 0 : index
    %c0_19 = arith.constant 0 : index
    %c0_20 = arith.constant 0 : index
    %34 = vector.load %arg6[%c0_17, %c0_18, %c0_19, %c0_20] : memref<1x4x1x24xf32, #tpu.memory_space<vmem>>, vector<1x4x1x24xf32>
    %35 = vector.shape_cast %34 : vector<1x4x1x24xf32> to vector<4x1x24xf32>
    %36 = vector.broadcast %35 : vector<4x1x24xf32> to vector<4x8x24xf32>
    %37 = arith.addf %33, %36 : vector<4x8x24xf32>
    %38 = vector.extract_strided_slice %37 {offsets = [0, 0, 0], sizes = [4, 8, 8], strides = [1, 1, 1]} : vector<4x8x24xf32> to vector<4x8x8xf32>
    %39 = vector.extract_strided_slice %37 {offsets = [0, 0, 8], sizes = [4, 8, 8], strides = [1, 1, 1]} : vector<4x8x24xf32> to vector<4x8x8xf32>
    %40 = vector.extract_strided_slice %37 {offsets = [0, 0, 16], sizes = [4, 8, 8], strides = [1, 1, 1]} : vector<4x8x24xf32> to vector<4x8x8xf32>
    "tpu.trace_start"() <{level = 10 : i32, message = "hqe,hke->hqk"}> : () -> ()
    %cst_21 = arith.constant dense<0.000000e+00> : vector<4x8x8xf32>
    %41 = tpu.matmul %38, %39, %cst_21 {dimension_numbers = #tpu.dot_dimension_numbers<[2], [2], [1], [1], [0, 0, 0, 1, 1, 1], [0], [0]>} : vector<4x8x8xf32>, vector<4x8x8xf32>, vector<4x8x8xf32> -> vector<4x8x8xf32>
    "tpu.trace_stop"() : () -> ()
    %cst_22 = arith.constant dense<0xFF800000> : vector<4x8xf32>
    %42 = vector.multi_reduction <maximumf>, %41, %cst_22 [2] : vector<4x8x8xf32> to vector<4x8xf32>
    %43 = vector.shape_cast %42 : vector<4x8xf32> to vector<4x8x1xf32>
    %44 = vector.broadcast %43 : vector<4x8x1xf32> to vector<4x8x8xf32>
    %45 = arith.subf %41, %44 : vector<4x8x8xf32>
    %46 = math.exp %45 : vector<4x8x8xf32>
    %cst_23 = arith.constant dense<0.000000e+00> : vector<4x8xf32>
    %47 = vector.multi_reduction <add>, %46, %cst_23 [2] : vector<4x8x8xf32> to vector<4x8xf32>
    %48 = vector.shape_cast %47 : vector<4x8xf32> to vector<4x8x1xf32>
    %49 = tpu.reciprocal %48 {approx = true} : vector<4x8x1xf32> -> vector<4x8x1xf32>
    %50 = vector.broadcast %49 : vector<4x8x1xf32> to vector<4x8x8xf32>
    %51 = arith.mulf %46, %50 : vector<4x8x8xf32>
    "tpu.trace_start"() <{level = 10 : i32, message = "hqk,hke->hqe"}> : () -> ()
    %cst_24 = arith.constant dense<0.000000e+00> : vector<4x8x8xf32>
    %52 = tpu.matmul %51, %40, %cst_24 {dimension_numbers = #tpu.dot_dimension_numbers<[2], [1], [1], [2], [0, 0, 0, 1, 1, 2], [0], [0]>} : vector<4x8x8xf32>, vector<4x8x8xf32>, vector<4x8x8xf32> -> vector<4x8x8xf32>
    "tpu.trace_stop"() : () -> ()
    %c0_25 = arith.constant 0 : index
    %c0_26 = arith.constant 0 : index
    %c0_27 = arith.constant 0 : index
    %c0_28 = arith.constant 0 : index
    %53 = vector.load %arg7[%c0_25, %c0_26, %c0_27, %c0_28] : memref<1x4x8x32xf32, #tpu.memory_space<vmem>>, vector<1x4x8x32xf32>
    %54 = vector.shape_cast %53 : vector<1x4x8x32xf32> to vector<4x8x32xf32>
    "tpu.trace_start"() <{level = 10 : i32, message = "hqe,hef->hqf"}> : () -> ()
    %cst_29 = arith.constant dense<0.000000e+00> : vector<4x8x32xf32>
    %55 = tpu.matmul %52, %54, %cst_29 {dimension_numbers = #tpu.dot_dimension_numbers<[2], [1], [1], [2], [0, 0, 0, 1, 1, 2], [0], [0]>} : vector<4x8x8xf32>, vector<4x8x32xf32>, vector<4x8x32xf32> -> vector<4x8x32xf32>
    "tpu.trace_stop"() : () -> ()
    %cst_30 = arith.constant dense<0.000000e+00> : vector<8x32xf32>
    %56 = vector.multi_reduction <add>, %55, %cst_30 [0] : vector<4x8x32xf32> to vector<8x32xf32>
    %c0_31 = arith.constant 0 : index
    %c0_32 = arith.constant 0 : index
    %c0_33 = arith.constant 0 : index
    %57 = vector.load %arg8[%c0_31, %c0_32, %c0_33] : memref<1x1x32xf32, #tpu.memory_space<vmem>>, vector<1x1x32xf32>
    %58 = vector.shape_cast %57 : vector<1x1x32xf32> to vector<1x32xf32>
    %59 = vector.broadcast %58 : vector<1x32xf32> to vector<8x32xf32>
    %60 = arith.addf %56, %59 : vector<8x32xf32>
    %61 = arith.addf %3, %60 : vector<8x32xf32>
    %c0_34 = arith.constant 0 : index
    %c0_35 = arith.constant 0 : index
    %c0_36 = arith.constant 0 : index
    %62 = vector.load %arg9[%c0_34, %c0_35, %c0_36] : memref<1x1x32xf32, #tpu.memory_space<vmem>>, vector<1x1x32xf32>
    %63 = vector.shape_cast %62 : vector<1x1x32xf32> to vector<1x32xf32>
    %c0_37 = arith.constant 0 : index
    %c0_38 = arith.constant 0 : index
    %c0_39 = arith.constant 0 : index
    %64 = vector.load %arg10[%c0_37, %c0_38, %c0_39] : memref<1x1x32xf32, #tpu.memory_space<vmem>>, vector<1x1x32xf32>
    %65 = vector.shape_cast %64 : vector<1x1x32xf32> to vector<1x32xf32>
    %cst_40 = arith.constant dense<0.000000e+00> : vector<8xf32>
    %66 = vector.multi_reduction <add>, %61, %cst_40 [1] : vector<8x32xf32> to vector<8xf32>
    %67 = vector.shape_cast %66 : vector<8xf32> to vector<8x1xf32>
    %cst_41 = arith.constant 3.200000e+01 : f32
    %68 = vector.broadcast %cst_41 : f32 to vector<8x1xf32>
    %69 = arith.divf %67, %68 : vector<8x1xf32>
    %70 = vector.broadcast %69 : vector<8x1xf32> to vector<8x32xf32>
    %71 = arith.subf %61, %70 : vector<8x32xf32>
    %72 = arith.mulf %71, %71 : vector<8x32xf32>
    %cst_42 = arith.constant dense<0.000000e+00> : vector<8xf32>
    %73 = vector.multi_reduction <add>, %72, %cst_42 [1] : vector<8x32xf32> to vector<8xf32>
    %74 = vector.shape_cast %73 : vector<8xf32> to vector<8x1xf32>
    %cst_43 = arith.constant 3.200000e+01 : f32
    %75 = vector.broadcast %cst_43 : f32 to vector<8x1xf32>
    %76 = arith.divf %74, %75 : vector<8x1xf32>
    %77 = vector.broadcast %69 : vector<8x1xf32> to vector<8x32xf32>
    %78 = arith.subf %61, %77 : vector<8x32xf32>
    %cst_44 = arith.constant 9.99999974E-6 : f32
    %79 = vector.broadcast %cst_44 : f32 to vector<8x1xf32>
    %80 = arith.addf %76, %79 : vector<8x1xf32>
    %81 = math.rsqrt %80 : vector<8x1xf32>
    %82 = vector.broadcast %81 : vector<8x1xf32> to vector<8x32xf32>
    %83 = arith.mulf %78, %82 : vector<8x32xf32>
    %84 = vector.broadcast %63 : vector<1x32xf32> to vector<8x32xf32>
    %85 = arith.mulf %83, %84 : vector<8x32xf32>
    %86 = vector.broadcast %65 : vector<1x32xf32> to vector<8x32xf32>
    %87 = arith.addf %85, %86 : vector<8x32xf32>
    %c0_45 = arith.constant 0 : index
    %c0_46 = arith.constant 0 : index
    %c0_47 = arith.constant 0 : index
    %88 = vector.load %arg11[%c0_45, %c0_46, %c0_47] : memref<1x32x64xf32, #tpu.memory_space<vmem>>, vector<1x32x64xf32>
    %89 = vector.shape_cast %88 : vector<1x32x64xf32> to vector<32x64xf32>
    %cst_48 = arith.constant dense<0.000000e+00> : vector<8x64xf32>
    %90 = tpu.matmul %87, %89, %cst_48 {dimension_numbers = #tpu.dot_dimension_numbers<[1], [0], [0], [1], [0, 0, 1, 1], [], []>} : vector<8x32xf32>, vector<32x64xf32>, vector<8x64xf32> -> vector<8x64xf32>
    %c0_49 = arith.constant 0 : index
    %c0_50 = arith.constant 0 : index
    %c0_51 = arith.constant 0 : index
    %91 = vector.load %arg12[%c0_49, %c0_50, %c0_51] : memref<1x1x64xf32, #tpu.memory_space<vmem>>, vector<1x1x64xf32>
    %92 = vector.shape_cast %91 : vector<1x1x64xf32> to vector<1x64xf32>
    %93 = vector.broadcast %92 : vector<1x64xf32> to vector<8x64xf32>
    %94 = arith.addf %90, %93 : vector<8x64xf32>
    %95 = arith.mulf %94, %94 : vector<8x64xf32>
    %96 = arith.mulf %94, %95 : vector<8x64xf32>
    %cst_52 = arith.constant 4.471500e-02 : f32
    %97 = vector.broadcast %cst_52 : f32 to vector<8x64xf32>
    %98 = arith.mulf %97, %96 : vector<8x64xf32>
    %99 = arith.addf %94, %98 : vector<8x64xf32>
    %cst_53 = arith.constant 0.797884583 : f32
    %100 = vector.broadcast %cst_53 : f32 to vector<8x64xf32>
    %101 = arith.mulf %100, %99 : vector<8x64xf32>
    %102 = math.tanh %101 : vector<8x64xf32>
    %cst_54 = arith.constant 1.000000e+00 : f32
    %103 = vector.broadcast %cst_54 : f32 to vector<8x64xf32>
    %104 = arith.addf %103, %102 : vector<8x64xf32>
    %cst_55 = arith.constant 5.000000e-01 : f32
    %105 = vector.broadcast %cst_55 : f32 to vector<8x64xf32>
    %106 = arith.mulf %105, %104 : vector<8x64xf32>
    %107 = arith.mulf %94, %106 : vector<8x64xf32>
    %c0_56 = arith.constant 0 : index
    %c0_57 = arith.constant 0 : index
    %c0_58 = arith.constant 0 : index
    %108 = vector.load %arg13[%c0_56, %c0_57, %c0_58] : memref<1x64x32xf32, #tpu.memory_space<vmem>>, vector<1x64x32xf32>
    %109 = vector.shape_cast %108 : vector<1x64x32xf32> to vector<64x32xf32>
    %cst_59 = arith.constant dense<0.000000e+00> : vector<8x32xf32>
    %110 = tpu.matmul %107, %109, %cst_59 {dimension_numbers = #tpu.dot_dimension_numbers<[1], [0], [0], [1], [0, 0, 1, 1], [], []>} : vector<8x64xf32>, vector<64x32xf32>, vector<8x32xf32> -> vector<8x32xf32>
    %c0_60 = arith.constant 0 : index
    %c0_61 = arith.constant 0 : index
    %c0_62 = arith.constant 0 : index
    %111 = vector.load %arg14[%c0_60, %c0_61, %c0_62] : memref<1x1x32xf32, #tpu.memory_space<vmem>>, vector<1x1x32xf32>
    %112 = vector.shape_cast %111 : vector<1x1x32xf32> to vector<1x32xf32>
    %113 = vector.broadcast %112 : vector<1x32xf32> to vector<8x32xf32>
    %114 = arith.addf %110, %113 : vector<8x32xf32>
    %115 = arith.addf %61, %114 : vector<8x32xf32>
    %c0_63 = arith.constant 0 : index
    %c0_64 = arith.constant 0 : index
    %116 = vector.load %arg18[%c0_63, %c0_64] : memref<8x32xf32, #tpu.memory_space<vmem>>, vector<8x32xf32>
    tpu.vector_store %arg18[%c0_63, %c0_64], %115 {strides = array<i32>} : memref<8x32xf32, #tpu.memory_space<vmem>>, vector<8x32xf32>,
    %c1_i32 = arith.constant 1 : i32
    %117 = arith.cmpi eq, %arg1, %c1_i32 : i32
    %118 = arith.extui %117 : i1 to i32
    %c0_i32_65 = arith.constant 0 : i32
    %119 = arith.cmpi ne, %118, %c0_i32_65 : i32
    scf.if %119 {
      %c0_66 = arith.constant 0 : index
      %c0_67 = arith.constant 0 : index
      %120 = vector.load %arg15[%c0_66, %c0_67] : memref<1x32xf32, #tpu.memory_space<vmem>>, vector<1x32xf32>
      %c0_68 = arith.constant 0 : index
      %c0_69 = arith.constant 0 : index
      %121 = vector.load %arg16[%c0_68, %c0_69] : memref<1x32xf32, #tpu.memory_space<vmem>>, vector<1x32xf32>
      %cst_70 = arith.constant dense<0.000000e+00> : vector<8xf32>
      %122 = vector.multi_reduction <add>, %115, %cst_70 [1] : vector<8x32xf32> to vector<8xf32>
      %123 = vector.shape_cast %122 : vector<8xf32> to vector<8x1xf32>
      %cst_71 = arith.constant 3.200000e+01 : f32
      %124 = vector.broadcast %cst_71 : f32 to vector<8x1xf32>
      %125 = arith.divf %123, %124 : vector<8x1xf32>
      %126 = vector.broadcast %125 : vector<8x1xf32> to vector<8x32xf32>
      %127 = arith.subf %115, %126 : vector<8x32xf32>
      %128 = arith.mulf %127, %127 : vector<8x32xf32>
      %cst_72 = arith.constant dense<0.000000e+00> : vector<8xf32>
      %129 = vector.multi_reduction <add>, %128, %cst_72 [1] : vector<8x32xf32> to vector<8xf32>
      %130 = vector.shape_cast %129 : vector<8xf32> to vector<8x1xf32>
      %cst_73 = arith.constant 3.200000e+01 : f32
      %131 = vector.broadcast %cst_73 : f32 to vector<8x1xf32>
      %132 = arith.divf %130, %131 : vector<8x1xf32>
      %133 = vector.broadcast %125 : vector<8x1xf32> to vector<8x32xf32>
      %134 = arith.subf %115, %133 : vector<8x32xf32>
      %cst_74 = arith.constant 9.99999974E-6 : f32
      %135 = vector.broadcast %cst_74 : f32 to vector<8x1xf32>
      %136 = arith.addf %132, %135 : vector<8x1xf32>
      %137 = math.rsqrt %136 : vector<8x1xf32>
      %138 = vector.broadcast %137 : vector<8x1xf32> to vector<8x32xf32>
      %139 = arith.mulf %134, %138 : vector<8x32xf32>
      %140 = vector.broadcast %120 : vector<1x32xf32> to vector<8x32xf32>
      %141 = arith.mulf %139, %140 : vector<8x32xf32>
      %142 = vector.broadcast %121 : vector<1x32xf32> to vector<8x32xf32>
      %143 = arith.addf %141, %142 : vector<8x32xf32>
      %c0_75 = arith.constant 0 : index
      %c0_76 = arith.constant 0 : index
      %c0_77 = arith.constant 0 : index
      %144 = vector.load %arg17[%c0_75, %c0_76, %c0_77] : memref<1x8x32xf32, #tpu.memory_space<vmem>>, vector<1x8x32xf32>
      %145 = vector.shape_cast %144 : vector<1x8x32xf32> to vector<8x32xf32>
      %146 = vector.shape_cast %143 : vector<8x32xf32> to vector<1x8x32xf32>
      tpu.vector_store %arg17[%c0_75, %c0_76, %c0_77], %146 {strides = array<i32>} : memref<1x8x32xf32, #tpu.memory_space<vmem>>, vector<1x8x32xf32>,
    } else {
    }
    return
  }
  func.func @transform_0(%arg0: i32, %arg1: i32) -> (i32, i32, i32) {
    %c0_i32 = arith.constant 0 : i32
    %c0_i32_0 = arith.constant 0 : i32
    %c0_i32_1 = arith.constant 0 : i32
    return %arg0, %c0_i32, %c0_i32_0 : i32, i32, i32
  }
  func.func @transform_1(%arg0: i32, %arg1: i32) -> (i32, i32, i32) {
    %c0_i32 = arith.constant 0 : i32
    %c0_i32_0 = arith.constant 0 : i32
    %c0_i32_1 = arith.constant 0 : i32
    return %arg1, %c0_i32, %c0_i32_0 : i32, i32, i32
  }
  func.func @transform_2(%arg0: i32, %arg1: i32) -> (i32, i32, i32) {
    %c0_i32 = arith.constant 0 : i32
    %c0_i32_0 = arith.constant 0 : i32
    %c0_i32_1 = arith.constant 0 : i32
    return %arg1, %c0_i32, %c0_i32_0 : i32, i32, i32
  }
  func.func @transform_3(%arg0: i32, %arg1: i32) -> (i32, i32, i32, i32) {
    %c0_i32 = arith.constant 0 : i32
    %c0_i32_0 = arith.constant 0 : i32
    %c0_i32_1 = arith.constant 0 : i32
    %c0_i32_2 = arith.constant 0 : i32
    return %arg1, %c0_i32, %c0_i32_0, %c0_i32_1 : i32, i32, i32, i32
  }
  func.func @transform_4(%arg0: i32, %arg1: i32) -> (i32, i32, i32, i32) {
    %c0_i32 = arith.constant 0 : i32
    %c0_i32_0 = arith.constant 0 : i32
    %c0_i32_1 = arith.constant 0 : i32
    %c0_i32_2 = arith.constant 0 : i32
    return %arg1, %c0_i32, %c0_i32_0, %c0_i32_1 : i32, i32, i32, i32
  }
  func.func @transform_5(%arg0: i32, %arg1: i32) -> (i32, i32, i32, i32) {
    %c0_i32 = arith.constant 0 : i32
    %c0_i32_0 = arith.constant 0 : i32
    %c0_i32_1 = arith.constant 0 : i32
    %c0_i32_2 = arith.constant 0 : i32
    return %arg1, %c0_i32, %c0_i32_0, %c0_i32_1 : i32, i32, i32, i32
  }
  func.func @transform_6(%arg0: i32, %arg1: i32) -> (i32, i32, i32) {
    %c0_i32 = arith.constant 0 : i32
    %c0_i32_0 = arith.constant 0 : i32
    %c0_i32_1 = arith.constant 0 : i32
    return %arg1, %c0_i32, %c0_i32_0 : i32, i32, i32
  }
  func.func @transform_7(%arg0: i32, %arg1: i32) -> (i32, i32, i32) {
    %c0_i32 = arith.constant 0 : i32
    %c0_i32_0 = arith.constant 0 : i32
    %c0_i32_1 = arith.constant 0 : i32
    return %arg1, %c0_i32, %c0_i32_0 : i32, i32, i32
  }
  func.func @transform_8(%arg0: i32, %arg1: i32) -> (i32, i32, i32) {
    %c0_i32 = arith.constant 0 : i32
    %c0_i32_0 = arith.constant 0 : i32
    %c0_i32_1 = arith.constant 0 : i32
    return %arg1, %c0_i32, %c0_i32_0 : i32, i32, i32
  }
  func.func @transform_9(%arg0: i32, %arg1: i32) -> (i32, i32, i32) {
    %c0_i32 = arith.constant 0 : i32
    %c0_i32_0 = arith.constant 0 : i32
    %c0_i32_1 = arith.constant 0 : i32
    return %arg1, %c0_i32, %c0_i32_0 : i32, i32, i32
  }
  func.func @transform_10(%arg0: i32, %arg1: i32) -> (i32, i32, i32) {
    %c0_i32 = arith.constant 0 : i32
    %c0_i32_0 = arith.constant 0 : i32
    %c0_i32_1 = arith.constant 0 : i32
    return %arg1, %c0_i32, %c0_i32_0 : i32, i32, i32
  }
  func.func @transform_11(%arg0: i32, %arg1: i32) -> (i32, i32, i32) {
    %c0_i32 = arith.constant 0 : i32
    %c0_i32_0 = arith.constant 0 : i32
    %c0_i32_1 = arith.constant 0 : i32
    return %arg1, %c0_i32, %c0_i32_0 : i32, i32, i32
  }
  func.func @transform_12(%arg0: i32, %arg1: i32) -> (i32, i32, i32) {
    %c0_i32 = arith.constant 0 : i32
    %c0_i32_0 = arith.constant 0 : i32
    %c0_i32_1 = arith.constant 0 : i32
    return %arg1, %c0_i32, %c0_i32_0 : i32, i32, i32
  }
  func.func @transform_13(%arg0: i32, %arg1: i32) -> (i32, i32) {
    %c0_i32 = arith.constant 0 : i32
    %c0_i32_0 = arith.constant 0 : i32
    %c0_i32_1 = arith.constant 0 : i32
    return %c0_i32, %c0_i32_0 : i32, i32
  }
  func.func @transform_14(%arg0: i32, %arg1: i32) -> (i32, i32) {
    %c0_i32 = arith.constant 0 : i32
    %c0_i32_0 = arith.constant 0 : i32
    %c0_i32_1 = arith.constant 0 : i32
    return %c0_i32, %c0_i32_0 : i32, i32
  }
  func.func @transform_15(%arg0: i32, %arg1: i32) -> (i32, i32, i32) {
    %c0_i32 = arith.constant 0 : i32
    %c0_i32_0 = arith.constant 0 : i32
    %c0_i32_1 = arith.constant 0 : i32
    return %arg0, %c0_i32, %c0_i32_0 : i32, i32, i32
  }
}

</mosaic_0001>

<llo_original>
// kernel: tpu_custom_call.1
$region0: #{tpu_custom_call.1}
  #allocation0 [shape = 'u32[]', space=smem, size = 0x4, offset = 0x4, fixed_abs, tag = 'smem constant byte address 0x4 - core index']
  #allocation1 [shape = 'u32[72,128]{1,0:T(1,128)}', space=vmem, size = 0x9000, scoped, tag = 'internal scratch']
  #allocation2 [shape = 'f32[8,32]{1,0:T(8,128)}', space=vmem, size = 0x1000, scoped, tag = 'scratch operand']
  %s0 = inlined_call_operand.vmem [shape: f32[2,8,32], index: 0, kind: input, shape index: {}]
  %s1 = inlined_call_operand.vmem [shape: f32[2,1,32], index: 1, kind: input, shape index: {}]
  %s2 = inlined_call_operand.vmem [shape: f32[2,1,32], index: 2, kind: input, shape index: {}]
  %s3 = inlined_call_operand.vmem [shape: f32[2,4,32,24], index: 3, kind: input, shape index: {}]
  %s4 = inlined_call_operand.vmem [shape: f32[2,4,1,24], index: 4, kind: input, shape index: {}]
  %s5 = inlined_call_operand.vmem [shape: f32[2,4,8,32], index: 5, kind: input, shape index: {}]
  %s6 = inlined_call_operand.vmem [shape: f32[2,1,32], index: 6, kind: input, shape index: {}]
  %s7 = inlined_call_operand.vmem [shape: f32[2,1,32], index: 7, kind: input, shape index: {}]
  %s8 = inlined_call_operand.vmem [shape: f32[2,1,32], index: 8, kind: input, shape index: {}]
  %s9 = inlined_call_operand.vmem [shape: f32[2,32,64], index: 9, kind: input, shape index: {}]
  %s10 = inlined_call_operand.vmem [shape: f32[2,1,64], index: 10, kind: input, shape index: {}]
  %s11 = inlined_call_operand.vmem [shape: f32[2,64,32], index: 11, kind: input, shape index: {}]
  %s12 = inlined_call_operand.vmem [shape: f32[2,1,32], index: 12, kind: input, shape index: {}]
  %s13 = inlined_call_operand.vmem [shape: f32[1,32], index: 13, kind: input, shape index: {}]
  %s14 = inlined_call_operand.vmem [shape: f32[1,32], index: 14, kind: input, shape index: {}]
  %s15 = inlined_call_operand.hbm [shape: f32[2,8,32], index: 15, kind: output, shape index: {}]
  %s16 = sld [smem:[#allocation0]]
  $region101: #{tpu_custom_call.1} parent=0
    _
  %s18 = ssub.s32 1, %s16
  %s19 = scalar_select 0, %s18, %s16
  $region1: #{tpu_custom_call.1} parent=0
    #allocation3 [shape = 'u8[8192]{0}', space=vmem, size = 0x2000, scoped, tag = 'output window, operand 0']
    #allocation4 [shape = 's32[2]{0}', space=sflag, size = 0x8, scoped, tag = 'scoped memory for tpu_custom_call.1']
    %20 = vsyncpa [#allocation4], 0
    %s21 = scalar_lea.sflag [#allocation4], 1
    %22 = vsyncpa %s21, 0
    loop: start=0, step=1, limit=6
    $region2: #{tpu_custom_call.1} parent=1 // loop_pre_header
      _
    $region3: #{tpu_custom_call.1} parent=1 // loop_header
      %s24 = sphi 0, %s28
      %p25 = scmp.ge.s32.totalorder %s24, 6
      %s31 = sphi 0, %s43
      %s32 = sphi 0, %s39
      %s33 = sphi 0, %s31
      %s34 = sphi 0, %s32
      %s35 = sphi 0, %s33
      %s36 = sphi 0, %s34
      %s46 = sphi 0, %s48
      %s49 = sphi 0, %s46
      %s50 = sphi 0, %s49
      %s66 = sphi 0, %s50
      %s72 = sphi 0, %s74
      %s75 = sphi 0, %s72
      %s76 = sphi 0, %s75
      %s92 = sphi 0, %s76
      %s98 = sphi 0, %s100
      %s101 = sphi 0, %s98
      %s102 = sphi 0, %s101
      %s118 = sphi 0, %s102
      %s124 = sphi 0, %s126
      %s127 = sphi 0, %s124
      %s128 = sphi 0, %s127
      %s144 = sphi 0, %s128
      %s150 = sphi 0, %s152
      %s153 = sphi 0, %s150
      %s154 = sphi 0, %s153
      %s170 = sphi 0, %s154
      %s176 = sphi 0, %s178
      %s179 = sphi 0, %s176
      %s180 = sphi 0, %s179
      %s196 = sphi 0, %s180
      %s202 = sphi 0, %s204
      %s205 = sphi 0, %s202
      %s206 = sphi 0, %s205
      %s222 = sphi 0, %s206
      %s228 = sphi 0, %s230
      %s231 = sphi 0, %s228
      %s232 = sphi 0, %s231
      %s248 = sphi 0, %s232
      %s254 = sphi 0, %s256
      %s257 = sphi 0, %s254
      %s258 = sphi 0, %s257
      %s274 = sphi 0, %s258
      %s280 = sphi 0, %s282
      %s283 = sphi 0, %s280
      %s284 = sphi 0, %s283
      %s300 = sphi 0, %s284
      %s306 = sphi 0, %s308
      %s309 = sphi 0, %s306
      %s310 = sphi 0, %s309
      %s326 = sphi 0, %s310
      %s332 = sphi 0, %s334
      %s335 = sphi 0, %s332
      %s336 = sphi 0, %s335
      %s352 = sphi 0, %s336
      %s358 = sphi 0, %s360
      %s361 = sphi 0, %s358
      %s362 = sphi 0, %s361
      %s378 = sphi 0, %s362
      %s382 = sphi 0, %s382
      %s384 = sphi 0, %s382
      %s385 = sphi 0, %s384
      %s399 = sphi 0, %s385
      %s403 = sphi 0, %s403
      %s405 = sphi 0, %s403
      %s406 = sphi 0, %s405
      %s420 = sphi 0, %s406
      %s426 = sphi 0, %s428
      %s429 = sphi 0, %s426
      %s430 = sphi 0, %s429
      %s446 = sphi 0, %s430
    $region4: #{tpu_custom_call.1} parent=1 // loop_header_branch
      %27 = sbr.rel (%p25) target = $region8
    $region5: #{tpu_custom_call.1} parent=1 // loop_body
      %s29 = ssub.s32 %s24, 1
      %s30 = ssub.s32 %s24, 2
      %s37 = sadd.s32 1, %s32
      %p38 = scmp.ge.s32.totalorder %s37, 2
      %s39 = scalar_select %p38, 0, %s37
      %s40 = sadd.s32 1, %s31
      %s41 = scalar_select %p38, %s40, %s31
      %p42 = scmp.ge.s32.totalorder %s41, 2
      %s43 = scalar_select %p42, 0, %s41
      %s44 = ssub.s32 %s31, %s43
      %p45 = scmp.eq.s32.totalorder %s44, 0
      %s47 = sadd.s32 %s46, 1
      %s48 = scalar_select %p45, %s46, %s47
      %p51 = pneg %p45
      %p52 = scmp.eq.s32.totalorder %s24, 3
      %p53 = por %p51, %p52
      %p54 = scmp.ne.s32.totalorder %s46, %s49
      %p55 = scmp.eq.s32.totalorder %s24, 0
      %p56 = por %p54, %p55
      %p57 = scmp.ne.s32.totalorder %s46, %s49
      %p58 = scmp.eq.s32.totalorder %s29, 3
      %p59 = por %p57, %p58
      %p60 = scmp.ne.s32.totalorder %s49, %s50
      %p61 = scmp.eq.s32.totalorder %s29, 0
      %p62 = por %p60, %p61
      %p63 = scmp.ne.s32.totalorder %s49, %s50
      %p64 = scmp.eq.s32.totalorder %s30, 3
      %p65 = por %p63, %p64
      %p67 = scmp.ne.s32.totalorder %s50, %s66
      %p68 = scmp.eq.s32.totalorder %s30, 0
      %p69 = por %p67, %p68
      %s70 = ssub.s32 %s32, %s39
      %p71 = scmp.eq.s32.totalorder %s70, 0
      %s73 = sadd.s32 %s72, 1
      %s74 = scalar_select %p71, %s72, %s73
      %p77 = pneg %p71
      %p78 = scmp.eq.s32.totalorder %s24, 3
      %p79 = por %p77, %p78
      %p80 = scmp.ne.s32.totalorder %s72, %s75
      %p81 = scmp.eq.s32.totalorder %s24, 0
      %p82 = por %p80, %p81
      %p83 = scmp.ne.s32.totalorder %s72, %s75
      %p84 = scmp.eq.s32.totalorder %s29, 3
      %p85 = por %p83, %p84
      %p86 = scmp.ne.s32.totalorder %s75, %s76
      %p87 = scmp.eq.s32.totalorder %s29, 0
      %p88 = por %p86, %p87
      %p89 = scmp.ne.s32.totalorder %s75, %s76
      %p90 = scmp.eq.s32.totalorder %s30, 3
      %p91 = por %p89, %p90
      %p93 = scmp.ne.s32.totalorder %s76, %s92
      %p94 = scmp.eq.s32.totalorder %s30, 0
      %p95 = por %p93, %p94
      %s96 = ssub.s32 %s32, %s39
      %p97 = scmp.eq.s32.totalorder %s96, 0
      %s99 = sadd.s32 %s98, 1
      %s100 = scalar_select %p97, %s98, %s99
      %p103 = pneg %p97
      %p104 = scmp.eq.s32.totalorder %s24, 3
      %p105 = por %p103, %p104
      %p106 = scmp.ne.s32.totalorder %s98, %s101
      %p107 = scmp.eq.s32.totalorder %s24, 0
      %p108 = por %p106, %p107
      %p109 = scmp.ne.s32.totalorder %s98, %s101
      %p110 = scmp.eq.s32.totalorder %s29, 3
      %p111 = por %p109, %p110
      %p112 = scmp.ne.s32.totalorder %s101, %s102
      %p113 = scmp.eq.s32.totalorder %s29, 0
      %p114 = por %p112, %p113
      %p115 = scmp.ne.s32.totalorder %s101, %s102
      %p116 = scmp.eq.s32.totalorder %s30, 3
      %p117 = por %p115, %p116
      %p119 = scmp.ne.s32.totalorder %s102, %s118
      %p120 = scmp.eq.s32.totalorder %s30, 0
      %p121 = por %p119, %p120
      %s122 = ssub.s32 %s32, %s39
      %p123 = scmp.eq.s32.totalorder %s122, 0
      %s125 = sadd.s32 %s124, 1
      %s126 = scalar_select %p123, %s124, %s125
      %p129 = pneg %p123
      %p130 = scmp.eq.s32.totalorder %s24, 3
      %p131 = por %p129, %p130
      %p132 = scmp.ne.s32.totalorder %s124, %s127
      %p133 = scmp.eq.s32.totalorder %s24, 0
      %p134 = por %p132, %p133
      %p135 = scmp.ne.s32.totalorder %s124, %s127
      %p136 = scmp.eq.s32.totalorder %s29, 3
      %p137 = por %p135, %p136
      %p138 = scmp.ne.s32.totalorder %s127, %s128
      %p139 = scmp.eq.s32.totalorder %s29, 0
      %p140 = por %p138, %p139
      %p141 = scmp.ne.s32.totalorder %s127, %s128
      %p142 = scmp.eq.s32.totalorder %s30, 3
      %p143 = por %p141, %p142
      %p145 = scmp.ne.s32.totalorder %s128, %s144
      %p146 = scmp.eq.s32.totalorder %s30, 0
      %p147 = por %p145, %p146
      %s148 = ssub.s32 %s32, %s39
      %p149 = scmp.eq.s32.totalorder %s148, 0
      %s151 = sadd.s32 %s150, 1
      %s152 = scalar_select %p149, %s150, %s151
      %p155 = pneg %p149
      %p156 = scmp.eq.s32.totalorder %s24, 3
      %p157 = por %p155, %p156
      %p158 = scmp.ne.s32.totalorder %s150, %s153
      %p159 = scmp.eq.s32.totalorder %s24, 0
      %p160 = por %p158, %p159
      %p161 = scmp.ne.s32.totalorder %s150, %s153
      %p162 = scmp.eq.s32.totalorder %s29, 3
      %p163 = por %p161, %p162
      %p164 = scmp.ne.s32.totalorder %s153, %s154
      %p165 = scmp.eq.s32.totalorder %s29, 0
      %p166 = por %p164, %p165
      %p167 = scmp.ne.s32.totalorder %s153, %s154
      %p168 = scmp.eq.s32.totalorder %s30, 3
      %p169 = por %p167, %p168
      %p171 = scmp.ne.s32.totalorder %s154, %s170
      %p172 = scmp.eq.s32.totalorder %s30, 0
      %p173 = por %p171, %p172
      %s174 = ssub.s32 %s32, %s39
      %p175 = scmp.eq.s32.totalorder %s174, 0
      %s177 = sadd.s32 %s176, 1
      %s178 = scalar_select %p175, %s176, %s177
      %p181 = pneg %p175
      %p182 = scmp.eq.s32.totalorder %s24, 3
      %p183 = por %p181, %p182
      %p184 = scmp.ne.s32.totalorder %s176, %s179
      %p185 = scmp.eq.s32.totalorder %s24, 0
      %p186 = por %p184, %p185
      %p187 = scmp.ne.s32.totalorder %s176, %s179
      %p188 = scmp.eq.s32.totalorder %s29, 3
      %p189 = por %p187, %p188
      %p190 = scmp.ne.s32.totalorder %s179, %s180
      %p191 = scmp.eq.s32.totalorder %s29, 0
      %p192 = por %p190, %p191
      %p193 = scmp.ne.s32.totalorder %s179, %s180
      %p194 = scmp.eq.s32.totalorder %s30, 3
      %p195 = por %p193, %p194
      %p197 = scmp.ne.s32.totalorder %s180, %s196
      %p198 = scmp.eq.s32.totalorder %s30, 0
      %p199 = por %p197, %p198
      %s200 = ssub.s32 %s32, %s39
      %p201 = scmp.eq.s32.totalorder %s200, 0
      %s203 = sadd.s32 %s202, 1
      %s204 = scalar_select %p201, %s202, %s203
      %p207 = pneg %p201
      %p208 = scmp.eq.s32.totalorder %s24, 3
      %p209 = por %p207, %p208
      %p210 = scmp.ne.s32.totalorder %s202, %s205
      %p211 = scmp.eq.s32.totalorder %s24, 0
      %p212 = por %p210, %p211
      %p213 = scmp.ne.s32.totalorder %s202, %s205
      %p214 = scmp.eq.s32.totalorder %s29, 3
      %p215 = por %p213, %p214
      %p216 = scmp.ne.s32.totalorder %s205, %s206
      %p217 = scmp.eq.s32.totalorder %s29, 0
      %p218 = por %p216, %p217
      %p219 = scmp.ne.s32.totalorder %s205, %s206
      %p220 = scmp.eq.s32.totalorder %s30, 3
      %p221 = por %p219, %p220
      %p223 = scmp.ne.s32.totalorder %s206, %s222
      %p224 = scmp.eq.s32.totalorder %s30, 0
      %p225 = por %p223, %p224
      %s226 = ssub.s32 %s32, %s39
      %p227 = scmp.eq.s32.totalorder %s226, 0
      %s229 = sadd.s32 %s228, 1
      %s230 = scalar_select %p227, %s228, %s229
      %p233 = pneg %p227
      %p234 = scmp.eq.s32.totalorder %s24, 3
      %p235 = por %p233, %p234
      %p236 = scmp.ne.s32.totalorder %s228, %s231
      %p237 = scmp.eq.s32.totalorder %s24, 0
      %p238 = por %p236, %p237
      %p239 = scmp.ne.s32.totalorder %s228, %s231
      %p240 = scmp.eq.s32.totalorder %s29, 3
      %p241 = por %p239, %p240
      %p242 = scmp.ne.s32.totalorder %s231, %s232
      %p243 = scmp.eq.s32.totalorder %s29, 0
      %p244 = por %p242, %p243
      %p245 = scmp.ne.s32.totalorder %s231, %s232
      %p246 = scmp.eq.s32.totalorder %s30, 3
      %p247 = por %p245, %p246
      %p249 = scmp.ne.s32.totalorder %s232, %s248
      %p250 = scmp.eq.s32.totalorder %s30, 0
      %p251 = por %p249, %p250
      %s252 = ssub.s32 %s32, %s39
      %p253 = scmp.eq.s32.totalorder %s252, 0
      %s255 = sadd.s32 %s254, 1
      %s256 = scalar_select %p253, %s254, %s255
      %p259 = pneg %p253
      %p260 = scmp.eq.s32.totalorder %s24, 3
      %p261 = por %p259, %p260
      %p262 = scmp.ne.s32.totalorder %s254, %s257
      %p263 = scmp.eq.s32.totalorder %s24, 0
      %p264 = por %p262, %p263
      %p265 = scmp.ne.s32.totalorder %s254, %s257
      %p266 = scmp.eq.s32.totalorder %s29, 3
      %p267 = por %p265, %p266
      %p268 = scmp.ne.s32.totalorder %s257, %s258
      %p269 = scmp.eq.s32.totalorder %s29, 0
      %p270 = por %p268, %p269
      %p271 = scmp.ne.s32.totalorder %s257, %s258
      %p272 = scmp.eq.s32.totalorder %s30, 3
      %p273 = por %p271, %p272
      %p275 = scmp.ne.s32.totalorder %s258, %s274
      %p276 = scmp.eq.s32.totalorder %s30, 0
      %p277 = por %p275, %p276
      %s278 = ssub.s32 %s32, %s39
      %p279 = scmp.eq.s32.totalorder %s278, 0
      %s281 = sadd.s32 %s280, 1
      %s282 = scalar_select %p279, %s280, %s281
      %p285 = pneg %p279
      %p286 = scmp.eq.s32.totalorder %s24, 3
      %p287 = por %p285, %p286
      %p288 = scmp.ne.s32.totalorder %s280, %s283
      %p289 = scmp.eq.s32.totalorder %s24, 0
      %p290 = por %p288, %p289
      %p291 = scmp.ne.s32.totalorder %s280, %s283
      %p292 = scmp.eq.s32.totalorder %s29, 3
      %p293 = por %p291, %p292
      %p294 = scmp.ne.s32.totalorder %s283, %s284
      %p295 = scmp.eq.s32.totalorder %s29, 0
      %p296 = por %p294, %p295
      %p297 = scmp.ne.s32.totalorder %s283, %s284
      %p298 = scmp.eq.s32.totalorder %s30, 3
      %p299 = por %p297, %p298
      %p301 = scmp.ne.s32.totalorder %s284, %s300
      %p302 = scmp.eq.s32.totalorder %s30, 0
      %p303 = por %p301, %p302
      %s304 = ssub.s32 %s32, %s39
      %p305 = scmp.eq.s32.totalorder %s304, 0
      %s307 = sadd.s32 %s306, 1
      %s308 = scalar_select %p305, %s306, %s307
      %p311 = pneg %p305
      %p312 = scmp.eq.s32.totalorder %s24, 3
      %p313 = por %p311, %p312
      %p314 = scmp.ne.s32.totalorder %s306, %s309
      %p315 = scmp.eq.s32.totalorder %s24, 0
      %p316 = por %p314, %p315
      %p317 = scmp.ne.s32.totalorder %s306, %s309
      %p318 = scmp.eq.s32.totalorder %s29, 3
      %p319 = por %p317, %p318
      %p320 = scmp.ne.s32.totalorder %s309, %s310
      %p321 = scmp.eq.s32.totalorder %s29, 0
      %p322 = por %p320, %p321
      %p323 = scmp.ne.s32.totalorder %s309, %s310
      %p324 = scmp.eq.s32.totalorder %s30, 3
      %p325 = por %p323, %p324
      %p327 = scmp.ne.s32.totalorder %s310, %s326
      %p328 = scmp.eq.s32.totalorder %s30, 0
      %p329 = por %p327, %p328
      %s330 = ssub.s32 %s32, %s39
      %p331 = scmp.eq.s32.totalorder %s330, 0
      %s333 = sadd.s32 %s332, 1
      %s334 = scalar_select %p331, %s332, %s333
      %p337 = pneg %p331
      %p338 = scmp.eq.s32.totalorder %s24, 3
      %p339 = por %p337, %p338
      %p340 = scmp.ne.s32.totalorder %s332, %s335
      %p341 = scmp.eq.s32.totalorder %s24, 0
      %p342 = por %p340, %p341
      %p343 = scmp.ne.s32.totalorder %s332, %s335
      %p344 = scmp.eq.s32.totalorder %s29, 3
      %p345 = por %p343, %p344
      %p346 = scmp.ne.s32.totalorder %s335, %s336
      %p347 = scmp.eq.s32.totalorder %s29, 0
      %p348 = por %p346, %p347
      %p349 = scmp.ne.s32.totalorder %s335, %s336
      %p350 = scmp.eq.s32.totalorder %s30, 3
      %p351 = por %p349, %p350
      %p353 = scmp.ne.s32.totalorder %s336, %s352
      %p354 = scmp.eq.s32.totalorder %s30, 0
      %p355 = por %p353, %p354
      %s356 = ssub.s32 %s32, %s39
      %p357 = scmp.eq.s32.totalorder %s356, 0
      %s359 = sadd.s32 %s358, 1
      %s360 = scalar_select %p357, %s358, %s359
      %p363 = pneg %p357
      %p364 = scmp.eq.s32.totalorder %s24, 3
      %p365 = por %p363, %p364
      %p366 = scmp.ne.s32.totalorder %s358, %s361
      %p367 = scmp.eq.s32.totalorder %s24, 0
      %p368 = por %p366, %p367
      %p369 = scmp.ne.s32.totalorder %s358, %s361
      %p370 = scmp.eq.s32.totalorder %s29, 3
      %p371 = por %p369, %p370
      %p372 = scmp.ne.s32.totalorder %s361, %s362
      %p373 = scmp.eq.s32.totalorder %s29, 0
      %p374 = por %p372, %p373
      %p375 = scmp.ne.s32.totalorder %s361, %s362
      %p376 = scmp.eq.s32.totalorder %s30, 3
      %p377 = por %p375, %p376
      %p379 = scmp.ne.s32.totalorder %s362, %s378
      %p380 = scmp.eq.s32.totalorder %s30, 0
      %p381 = por %p379, %p380
      %s383 = sadd.s32 %s382, 1
      %p386 = scmp.eq.s32.totalorder %s24, 3
      %p387 = scmp.ne.s32.totalorder %s382, %s384
      %p388 = scmp.eq.s32.totalorder %s24, 0
      %p389 = por %p387, %p388
      %p390 = scmp.ne.s32.totalorder %s382, %s384
      %p391 = scmp.eq.s32.totalorder %s29, 3
      %p392 = por %p390, %p391
      %p393 = scmp.ne.s32.totalorder %s384, %s385
      %p394 = scmp.eq.s32.totalorder %s29, 0
      %p395 = por %p393, %p394
      %p396 = scmp.ne.s32.totalorder %s384, %s385
      %p397 = scmp.eq.s32.totalorder %s30, 3
      %p398 = por %p396, %p397
      %p400 = scmp.ne.s32.totalorder %s385, %s399
      %p401 = scmp.eq.s32.totalorder %s30, 0
      %p402 = por %p400, %p401
      %s404 = sadd.s32 %s403, 1
      %p407 = scmp.eq.s32.totalorder %s24, 3
      %p408 = scmp.ne.s32.totalorder %s403, %s405
      %p409 = scmp.eq.s32.totalorder %s24, 0
      %p410 = por %p408, %p409
      %p411 = scmp.ne.s32.totalorder %s403, %s405
      %p412 = scmp.eq.s32.totalorder %s29, 3
      %p413 = por %p411, %p412
      %p414 = scmp.ne.s32.totalorder %s405, %s406
      %p415 = scmp.eq.s32.totalorder %s29, 0
      %p416 = por %p414, %p415
      %p417 = scmp.ne.s32.totalorder %s405, %s406
      %p418 = scmp.eq.s32.totalorder %s30, 3
      %p419 = por %p417, %p418
      %p421 = scmp.ne.s32.totalorder %s406, %s420
      %p422 = scmp.eq.s32.totalorder %s30, 0
      %p423 = por %p421, %p422
      %s424 = ssub.s32 %s31, %s43
      %p425 = scmp.eq.s32.totalorder %s424, 0
      %s427 = sadd.s32 %s426, 1
      %s428 = scalar_select %p425, %s426, %s427
      %p431 = pneg %p425
      %p432 = scmp.eq.s32.totalorder %s24, 3
      %p433 = por %p431, %p432
      %p434 = scmp.ne.s32.totalorder %s426, %s429
      %p435 = scmp.eq.s32.totalorder %s24, 0
      %p436 = por %p434, %p435
      %p437 = scmp.ne.s32.totalorder %s426, %s429
      %p438 = scmp.eq.s32.totalorder %s29, 3
      %p439 = por %p437, %p438
      %p440 = scmp.ne.s32.totalorder %s429, %s430
      %p441 = scmp.eq.s32.totalorder %s29, 0
      %p442 = por %p440, %p441
      %p443 = scmp.ne.s32.totalorder %s429, %s430
      %p444 = scmp.eq.s32.totalorder %s30, 3
      %p445 = por %p443, %p444
      %p447 = scmp.ne.s32.totalorder %s430, %s446
      %p448 = scmp.eq.s32.totalorder %s30, 0
      %p449 = por %p447, %p448
      %p450 = scmp.le.s32.totalorder 1, %s24
      %p451 = scmp.lt.s32.totalorder %s24, 5
      %p452 = pnand %p450, %p451
      %p453 = pneg %p452
      // Predicated region
      $region9: #{tpu_custom_call.1} parent=5 // pred_check
        _
      $region10: #{tpu_custom_call.1} parent=5 // pred_check_branch
        %455 = sbr.rel (%p452) target = $region12
      $region11: #{tpu_custom_call.1} parent=5 // pred_region
        %s456 = ssub.s32 %s24, 1
        // Predicated region
        $region13: #{tpu_custom_call.1} parent=11 // pred_check
          %p457 = pneg %p395
        $region14: #{tpu_custom_call.1} parent=11 // pred_check_branch
          %459 = sbr.rel (%p457) target = $region16
        $region15: #{tpu_custom_call.1} parent=11 // pred_region
          _
        $region16: #{tpu_custom_call.1} parent=11 // pred_fallthru
          _
        // Predicated region
        $region17: #{tpu_custom_call.1} parent=11 // pred_check
          %p460 = pneg %p416
        $region18: #{tpu_custom_call.1} parent=11 // pred_check_branch
          %462 = sbr.rel (%p460) target = $region20
        $region19: #{tpu_custom_call.1} parent=11 // pred_region
          _
        $region20: #{tpu_custom_call.1} parent=11 // pred_fallthru
          _
      $region12: #{tpu_custom_call.1} parent=5 // pred_fallthru
        _
      %p463 = scmp.lt.s32.totalorder %s24, 4
      // Predicated region
      $region21: #{tpu_custom_call.1} parent=5 // pred_check
        %p464 = pneg %p463
      $region22: #{tpu_custom_call.1} parent=5 // pred_check_branch
        %466 = sbr.rel (%p464) target = $region24
      $region23: #{tpu_custom_call.1} parent=5 // pred_region
        // Predicated region
        $region25: #{tpu_custom_call.1} parent=23 // pred_check
          %p467 = pneg %p56
        $region26: #{tpu_custom_call.1} parent=23 // pred_check_branch
          %469 = sbr.rel (%p467) target = $region28
        $region27: #{tpu_custom_call.1} parent=23 // pred_region
          %p470 = scmp.lt.s32.totalorder %s31, 1
          %s471 = scalar_select %p470, %s31, 1
          %s472 = smul.addr %s471, 8
          %s473 = scalar_lea.vmem %s0, %s472
        $region28: #{tpu_custom_call.1} parent=23 // pred_fallthru
          _
        // Predicated region
        $region29: #{tpu_custom_call.1} parent=23 // pred_check
          %p474 = pneg %p82
        $region30: #{tpu_custom_call.1} parent=23 // pred_check_branch
          %476 = sbr.rel (%p474) target = $region32
        $region31: #{tpu_custom_call.1} parent=23 // pred_region
          %p477 = scmp.lt.s32.totalorder %s32, 1
          %s478 = scalar_select %p477, %s32, 1
          %s479 = scalar_lea.vmem %s1, %s478
        $region32: #{tpu_custom_call.1} parent=23 // pred_fallthru
          _
        // Predicated region
        $region33: #{tpu_custom_call.1} parent=23 // pred_check
          %p480 = pneg %p108
        $region34: #{tpu_custom_call.1} parent=23 // pred_check_branch
          %482 = sbr.rel (%p480) target = $region36
        $region35: #{tpu_custom_call.1} parent=23 // pred_region
          %p483 = scmp.lt.s32.totalorder %s32, 1
          %s484 = scalar_select %p483, %s32, 1
          %s485 = scalar_lea.vmem %s2, %s484
        $region36: #{tpu_custom_call.1} parent=23 // pred_fallthru
          _
        // Predicated region
        $region37: #{tpu_custom_call.1} parent=23 // pred_check
          %p486 = pneg %p134
        $region38: #{tpu_custom_call.1} parent=23 // pred_check_branch
          %488 = sbr.rel (%p486) target = $region40
        $region39: #{tpu_custom_call.1} parent=23 // pred_region
          %p489 = scmp.lt.s32.totalorder %s32, 1
          %s490 = scalar_select %p489, %s32, 1
          %s491 = smul.addr %s490, 16
          %s492 = smul.addr %s491, 8
          %s493 = scalar_lea.vmem %s3, %s492
        $region40: #{tpu_custom_call.1} parent=23 // pred_fallthru
          _
        // Predicated region
        $region41: #{tpu_custom_call.1} parent=23 // pred_check
          %p494 = pneg %p160
        $region42: #{tpu_custom_call.1} parent=23 // pred_check_branch
          %496 = sbr.rel (%p494) target = $region44
        $region43: #{tpu_custom_call.1} parent=23 // pred_region
          %p497 = scmp.lt.s32.totalorder %s32, 1
          %s498 = scalar_select %p497, %s32, 1
          %s499 = smul.addr %s498, 4
          %s500 = scalar_lea.vmem %s4, %s499
        $region44: #{tpu_custom_call.1} parent=23 // pred_fallthru
          _
        // Predicated region
        $region45: #{tpu_custom_call.1} parent=23 // pred_check
          %p501 = pneg %p186
        $region46: #{tpu_custom_call.1} parent=23 // pred_check_branch
          %503 = sbr.rel (%p501) target = $region48
        $region47: #{tpu_custom_call.1} parent=23 // pred_region
          %p504 = scmp.lt.s32.totalorder %s32, 1
          %s505 = scalar_select %p504, %s32, 1
          %s506 = smul.addr %s505, 4
          %s507 = smul.addr %s506, 8
          %s508 = scalar_lea.vmem %s5, %s507
        $region48: #{tpu_custom_call.1} parent=23 // pred_fallthru
          _
        // Predicated region
        $region49: #{tpu_custom_call.1} parent=23 // pred_check
          %p509 = pneg %p212
        $region50: #{tpu_custom_call.1} parent=23 // pred_check_branch
          %511 = sbr.rel (%p509) target = $region52
        $region51: #{tpu_custom_call.1} parent=23 // pred_region
          %p512 = scmp.lt.s32.totalorder %s32, 1
          %s513 = scalar_select %p512, %s32, 1
          %s514 = scalar_lea.vmem %s6, %s513
        $region52: #{tpu_custom_call.1} parent=23 // pred_fallthru
          _
        // Predicated region
        $region53: #{tpu_custom_call.1} parent=23 // pred_check
          %p515 = pneg %p238
        $region54: #{tpu_custom_call.1} parent=23 // pred_check_branch
          %517 = sbr.rel (%p515) target = $region56
        $region55: #{tpu_custom_call.1} parent=23 // pred_region
          %p518 = scmp.lt.s32.totalorder %s32, 1
          %s519 = scalar_select %p518, %s32, 1
          %s520 = scalar_lea.vmem %s7, %s519
        $region56: #{tpu_custom_call.1} parent=23 // pred_fallthru
          _
        // Predicated region
        $region57: #{tpu_custom_call.1} parent=23 // pred_check
          %p521 = pneg %p264
        $region58: #{tpu_custom_call.1} parent=23 // pred_check_branch
          %523 = sbr.rel (%p521) target = $region60
        $region59: #{tpu_custom_call.1} parent=23 // pred_region
          %p524 = scmp.lt.s32.totalorder %s32, 1
          %s525 = scalar_select %p524, %s32, 1
          %s526 = scalar_lea.vmem %s8, %s525
        $region60: #{tpu_custom_call.1} parent=23 // pred_fallthru
          _
        // Predicated region
        $region61: #{tpu_custom_call.1} parent=23 // pred_check
          %p527 = pneg %p290
        $region62: #{tpu_custom_call.1} parent=23 // pred_check_branch
          %529 = sbr.rel (%p527) target = $region64
        $region63: #{tpu_custom_call.1} parent=23 // pred_region
          %p530 = scmp.lt.s32.totalorder %s32, 1
          %s531 = scalar_select %p530, %s32, 1
          %s532 = smul.addr %s531, 4
          %s533 = smul.addr %s532, 8
          %s534 = scalar_lea.vmem %s9, %s533
        $region64: #{tpu_custom_call.1} parent=23 // pred_fallthru
          _
        // Predicated region
        $region65: #{tpu_custom_call.1} parent=23 // pred_check
          %p535 = pneg %p316
        $region66: #{tpu_custom_call.1} parent=23 // pred_check_branch
          %537 = sbr.rel (%p535) target = $region68
        $region67: #{tpu_custom_call.1} parent=23 // pred_region
          %p538 = scmp.lt.s32.totalorder %s32, 1
          %s539 = scalar_select %p538, %s32, 1
          %s540 = scalar_lea.vmem %s10, %s539
        $region68: #{tpu_custom_call.1} parent=23 // pred_fallthru
          _
        // Predicated region
        $region69: #{tpu_custom_call.1} parent=23 // pred_check
          %p541 = pneg %p342
        $region70: #{tpu_custom_call.1} parent=23 // pred_check_branch
          %543 = sbr.rel (%p541) target = $region72
        $region71: #{tpu_custom_call.1} parent=23 // pred_region
          %p544 = scmp.lt.s32.totalorder %s32, 1
          %s545 = scalar_select %p544, %s32, 1
          %s546 = smul.addr %s545, 8
          %s547 = smul.addr %s546, 8
          %s548 = scalar_lea.vmem %s11, %s547
        $region72: #{tpu_custom_call.1} parent=23 // pred_fallthru
          _
        // Predicated region
        $region73: #{tpu_custom_call.1} parent=23 // pred_check
          %p549 = pneg %p368
        $region74: #{tpu_custom_call.1} parent=23 // pred_check_branch
          %551 = sbr.rel (%p549) target = $region76
        $region75: #{tpu_custom_call.1} parent=23 // pred_region
          %p552 = scmp.lt.s32.totalorder %s32, 1
          %s553 = scalar_select %p552, %s32, 1
          %s554 = scalar_lea.vmem %s12, %s553
        $region76: #{tpu_custom_call.1} parent=23 // pred_fallthru
          _
      $region24: #{tpu_custom_call.1} parent=5 // pred_fallthru
        _
      %p555 = scmp.le.s32.totalorder 1, %s24
      %p556 = scmp.lt.s32.totalorder %s24, 5
      %p557 = pnand %p555, %p556
      %p558 = pneg %p557
      // Predicated region
      $region77: #{tpu_custom_call.1} parent=5 // pred_check
        _
      $region78: #{tpu_custom_call.1} parent=5 // pred_check_branch
        %560 = sbr.rel (%p557) target = $region80
      $region79: #{tpu_custom_call.1} parent=5 // pred_region
        %s561 = ssub.s32 %s24, 1
        %p562 = scmp.lt.s32.totalorder %s33, 1
        %s563 = scalar_select %p562, %s33, 1
        %s564 = smul.addr %s563, 8
        %s565 = scalar_lea.vmem %s0, %s564
        %p566 = pneg %p62
        %p567 = pneg %p59
        %p568 = scmp.lt.s32.totalorder %s34, 1
        %s569 = scalar_select %p568, %s34, 1
        %s570 = scalar_lea.vmem %s1, %s569
        %p571 = pneg %p88
        %p572 = pneg %p85
        %p573 = scmp.lt.s32.totalorder %s34, 1
        %s574 = scalar_select %p573, %s34, 1
        %s575 = scalar_lea.vmem %s2, %s574
        %p576 = pneg %p114
        %p577 = pneg %p111
        %p578 = scmp.lt.s32.totalorder %s34, 1
        %s579 = scalar_select %p578, %s34, 1
        %s580 = smul.addr %s579, 16
        %s581 = smul.addr %s580, 8
        %s582 = scalar_lea.vmem %s3, %s581
        %p583 = pneg %p140
        %p584 = pneg %p137
        %p585 = scmp.lt.s32.totalorder %s34, 1
        %s586 = scalar_select %p585, %s34, 1
        %s587 = smul.addr %s586, 4
        %s588 = scalar_lea.vmem %s4, %s587
        %p589 = pneg %p166
        %p590 = pneg %p163
        %p591 = scmp.lt.s32.totalorder %s34, 1
        %s592 = scalar_select %p591, %s34, 1
        %s593 = smul.addr %s592, 4
        %s594 = smul.addr %s593, 8
        %s595 = scalar_lea.vmem %s5, %s594
        %p596 = pneg %p192
        %p597 = pneg %p189
        %p598 = scmp.lt.s32.totalorder %s34, 1
        %s599 = scalar_select %p598, %s34, 1
        %s600 = scalar_lea.vmem %s6, %s599
        %p601 = pneg %p218
        %p602 = pneg %p215
        %p603 = scmp.lt.s32.totalorder %s34, 1
        %s604 = scalar_select %p603, %s34, 1
        %s605 = scalar_lea.vmem %s7, %s604
        %p606 = pneg %p244
        %p607 = pneg %p241
        %p608 = scmp.lt.s32.totalorder %s34, 1
        %s609 = scalar_select %p608, %s34, 1
        %s610 = scalar_lea.vmem %s8, %s609
        %p611 = pneg %p270
        %p612 = pneg %p267
        %p613 = scmp.lt.s32.totalorder %s34, 1
        %s614 = scalar_select %p613, %s34, 1
        %s615 = smul.addr %s614, 4
        %s616 = smul.addr %s615, 8
        %s617 = scalar_lea.vmem %s9, %s616
        %p618 = pneg %p296
        %p619 = pneg %p293
        %p620 = scmp.lt.s32.totalorder %s34, 1
        %s621 = scalar_select %p620, %s34, 1
        %s622 = scalar_lea.vmem %s10, %s621
        %p623 = pneg %p322
        %p624 = pneg %p319
        %p625 = scmp.lt.s32.totalorder %s34, 1
        %s626 = scalar_select %p625, %s34, 1
        %s627 = smul.addr %s626, 8
        %s628 = smul.addr %s627, 8
        %s629 = scalar_lea.vmem %s11, %s628
        %p630 = pneg %p348
        %p631 = pneg %p345
        %p632 = scmp.lt.s32.totalorder %s34, 1
        %s633 = scalar_select %p632, %s34, 1
        %s634 = scalar_lea.vmem %s12, %s633
        %p635 = pneg %p374
        %p636 = pneg %p371
        %p637 = pneg %p395
        %p638 = pneg %p392
        %p639 = pneg %p416
        %p640 = pneg %p413
        %p641 = pneg %p442
        %p642 = pneg %p439
        %s643 = sand.u32 %s429, 1
        %s644 = scalar_lea.sflag [#allocation4], %s643
        %s645 = sand.u32 %s429, 1
        %s646 = smul.addr %s645, 8
        %s647 = scalar_lea.vmem [#allocation3], %s646
        %p648 = scmp.lt.s32.totalorder %s33, 1
        %s649 = scalar_select %p648, %s33, 1
        %s650 = smul.addr %s649, 8
        %s651 = scalar_lea.vmem %s0, %s650
        %p652 = scmp.lt.s32.totalorder %s34, 1
        %s653 = scalar_select %p652, %s34, 1
        %s654 = scalar_lea.vmem %s1, %s653
        %p655 = scmp.lt.s32.totalorder %s34, 1
        %s656 = scalar_select %p655, %s34, 1
        %s657 = scalar_lea.vmem %s2, %s656
        %p658 = scmp.lt.s32.totalorder %s34, 1
        %s659 = scalar_select %p658, %s34, 1
        %s660 = smul.addr %s659, 16
        %s661 = smul.addr %s660, 8
        %s662 = scalar_lea.vmem %s3, %s661
        %p663 = scmp.lt.s32.totalorder %s34, 1
        %s664 = scalar_select %p663, %s34, 1
        %s665 = smul.addr %s664, 4
        %s666 = scalar_lea.vmem %s4, %s665
        %p667 = scmp.lt.s32.totalorder %s34, 1
        %s668 = scalar_select %p667, %s34, 1
        %s669 = smul.addr %s668, 4
        %s670 = smul.addr %s669, 8
        %s671 = scalar_lea.vmem %s5, %s670
        %p672 = scmp.lt.s32.totalorder %s34, 1
        %s673 = scalar_select %p672, %s34, 1
        %s674 = scalar_lea.vmem %s6, %s673
        %p675 = scmp.lt.s32.totalorder %s34, 1
        %s676 = scalar_select %p675, %s34, 1
        %s677 = scalar_lea.vmem %s7, %s676
        %p678 = scmp.lt.s32.totalorder %s34, 1
        %s679 = scalar_select %p678, %s34, 1
        %s680 = scalar_lea.vmem %s8, %s679
        %p681 = scmp.lt.s32.totalorder %s34, 1
        %s682 = scalar_select %p681, %s34, 1
        %s683 = smul.addr %s682, 4
        %s684 = smul.addr %s683, 8
        %s685 = scalar_lea.vmem %s9, %s684
        %p686 = scmp.lt.s32.totalorder %s34, 1
        %s687 = scalar_select %p686, %s34, 1
        %s688 = scalar_lea.vmem %s10, %s687
        %p689 = scmp.lt.s32.totalorder %s34, 1
        %s690 = scalar_select %p689, %s34, 1
        %s691 = smul.addr %s690, 8
        %s692 = smul.addr %s691, 8
        %s693 = scalar_lea.vmem %s11, %s692
        %p694 = scmp.lt.s32.totalorder %s34, 1
        %s695 = scalar_select %p694, %s34, 1
        %s696 = scalar_lea.vmem %s12, %s695
        %p697 = scmp.eq.s32.totalorder %s34, 0
        // Predicated region
        $region81: #{tpu_custom_call.1} parent=79 // pred_check
          %p698 = pneg %p697
        $region82: #{tpu_custom_call.1} parent=79 // pred_check_branch
          %700 = sbr.rel (%p698) target = $region84
        $region83: #{tpu_custom_call.1} parent=79 // pred_region
          %v701 = vld [vmem:[%s651] sm:$0xff]
          %vm702 = vcmask 261120
          %703 = vst.msk [vmem:[#allocation2] sm:$0xff] %vm702, %v701
        $region84: #{tpu_custom_call.1} parent=79 // pred_fallthru
          _
        %v704 = vld [vmem:[#allocation2] sm:$0xff]
        %v705 = vld [vmem:[%s654] sm:$0x1]
        %v706 = vld [vmem:[%s657] sm:$0x1]
        %vm707 = vcmask 261120
        %v708 = vsel %vm707, %v704, 0.0
        %709 = vadd.xlane.f32.xlu0 %v708
        %v710 = vpop.xlane.xlu0 %709
        %v711 = vrcp.pop 32.0
        %v712 = vmul.f32 32.0, %v711
        %v713 = vsub.f32 1.0, %v712
        %v714 = vmul.f32 %v711, %v713
        %v715 = vadd.f32 %v711, %v714
        %vm716 = vweird.f32 %v711
        %v717 = vsel %vm716, %v711, %v715
        %v718 = vmul.f32 %v710, %v717
        %v719 = vsub.f32 %v704, %v718
        %v720 = vmul.f32 %v719, %v719
        %v721 = vsel %vm707, %v720, 0.0
        %722 = vadd.xlane.f32.xlu0 %v721
        %v723 = vpop.xlane.xlu0 %722
        %v724 = vmul.f32 %v723, %v717
        %v725 = vadd.f32 %v724, 1e-05
        %v726 = vrsqrt.pop %v725
        %v727 = vmul.f32 %v726, %v725
        %v728 = vmul.f32 %v727, %v726
        %v729 = vmul.f32 0.5, %v728
        %v730 = vsub.f32 1.5, %v729
        %v731 = vmul.f32 %v726, %v730
        %vm732 = vweird.f32 %v725
        %vm733 = vweird.f32 %v726
        %vm734 = vmor %vm732, %vm733
        %v735 = vsel %vm734, %v726, %v731
        %v736 = vmul.f32 %v719, %v735
        %v738 = vperm.slane %v705, 0
        %v740 = vmul.f32 %v736, %v738
        %v742 = vperm.slane %v706, 0
        %v744 = vadd.f32 %v740, %v742
        %v745 = vld [vmem:[%s662] sm:$0xff]
        %v746 = vld [vmem:[%s662 + $0x8] sm:$0xff]
        %v747 = vld [vmem:[%s662 + $0x10] sm:$0xff]
        %v748 = vld [vmem:[%s662 + $0x18] sm:$0xff]
        %v749 = vld [vmem:[%s662 + $0x20] sm:$0xff]
        %v750 = vld [vmem:[%s662 + $0x28] sm:$0xff]
        %v751 = vld [vmem:[%s662 + $0x30] sm:$0xff]
        %v752 = vld [vmem:[%s662 + $0x38] sm:$0xff]
        %v753 = vld [vmem:[%s662 + $0x40] sm:$0xff]
        %v754 = vld [vmem:[%s662 + $0x48] sm:$0xff]
        %v755 = vld [vmem:[%s662 + $0x50] sm:$0xff]
        %v756 = vld [vmem:[%s662 + $0x58] sm:$0xff]
        %v757 = vld [vmem:[%s662 + $0x60] sm:$0xff]
        %v758 = vld [vmem:[%s662 + $0x68] sm:$0xff]
        %v759 = vld [vmem:[%s662 + $0x70] sm:$0xff]
        %v760 = vld [vmem:[%s662 + $0x78] sm:$0xff]
        %761 = vxpose.xlu0.b32.start [1/16] %v745, 128
        %762 = vxpose.xlu0.b32.cont [2/16] %v746, 128
        %763 = vxpose.xlu0.b32.cont [3/16] %v747, 128
        %764 = vxpose.xlu0.b32.cont [4/16] %v748, 128
        %765 = vxpose.xlu0.b32.cont [5/16] 0.0, 128
        %766 = vxpose.xlu0.b32.cont [6/16] 0.0, 128
        %767 = vxpose.xlu0.b32.cont [7/16] 0.0, 128
        %768 = vxpose.xlu0.b32.cont [8/16] 0.0, 128
        %769 = vxpose.xlu0.b32.cont [9/16] 0.0, 128
        %770 = vxpose.xlu0.b32.cont [10/16] 0.0, 128
        %771 = vxpose.xlu0.b32.cont [11/16] 0.0, 128
        %772 = vxpose.xlu0.b32.cont [12/16] 0.0, 128
        %773 = vxpose.xlu0.b32.cont [13/16] 0.0, 128
        %774 = vxpose.xlu0.b32.cont [14/16] 0.0, 128
        %775 = vxpose.xlu0.b32.cont [15/16] 0.0, 128
        %776 = vxpose.xlu0.b32.end [16/16] 0.0, 128
        %v777 = vpop.trf.xlu0
        %v778 = vpop.trf.xlu0
        %v779 = vpop.trf.xlu0
        %v780 = vpop.trf.xlu0
        %v781 = vpop.trf.xlu0
        %v782 = vpop.trf.xlu0
        %v783 = vpop.trf.xlu0
        %v784 = vpop.trf.xlu0
        %v785 = vpop.trf.xlu0
        %v786 = vpop.trf.xlu0
        %v787 = vpop.trf.xlu0
        %v788 = vpop.trf.xlu0
        %v789 = vpop.trf.xlu0
        %v790 = vpop.trf.xlu0
        %v791 = vpop.trf.xlu0
        %v792 = vpop.trf.xlu0
        %793 = vxpose.xlu0.b32.start [1/16] %v749, 128
        %794 = vxpose.xlu0.b32.cont [2/16] %v750, 128
        %795 = vxpose.xlu0.b32.cont [3/16] %v751, 128
        %796 = vxpose.xlu0.b32.cont [4/16] %v752, 128
        %797 = vxpose.xlu0.b32.cont [5/16] 0.0, 128
        %798 = vxpose.xlu0.b32.cont [6/16] 0.0, 128
        %799 = vxpose.xlu0.b32.cont [7/16] 0.0, 128
        %800 = vxpose.xlu0.b32.cont [8/16] 0.0, 128
        %801 = vxpose.xlu0.b32.cont [9/16] 0.0, 128
        %802 = vxpose.xlu0.b32.cont [10/16] 0.0, 128
        %803 = vxpose.xlu0.b32.cont [11/16] 0.0, 128
        %804 = vxpose.xlu0.b32.cont [12/16] 0.0, 128
        %805 = vxpose.xlu0.b32.cont [13/16] 0.0, 128
        %806 = vxpose.xlu0.b32.cont [14/16] 0.0, 128
        %807 = vxpose.xlu0.b32.cont [15/16] 0.0, 128
        %808 = vxpose.xlu0.b32.end [16/16] 0.0, 128
        %v809 = vpop.trf.xlu0
        %v810 = vpop.trf.xlu0
        %v811 = vpop.trf.xlu0
        %v812 = vpop.trf.xlu0
        %v813 = vpop.trf.xlu0
        %v814 = vpop.trf.xlu0
        %v815 = vpop.trf.xlu0
        %v816 = vpop.trf.xlu0
        %v817 = vpop.trf.xlu0
        %v818 = vpop.trf.xlu0
        %v819 = vpop.trf.xlu0
        %v820 = vpop.trf.xlu0
        %v821 = vpop.trf.xlu0
        %v822 = vpop.trf.xlu0
        %v823 = vpop.trf.xlu0
        %v824 = vpop.trf.xlu0
        %825 = vxpose.xlu0.b32.start [1/16] %v753, 128
        %826 = vxpose.xlu0.b32.cont [2/16] %v754, 128
        %827 = vxpose.xlu0.b32.cont [3/16] %v755, 128
        %828 = vxpose.xlu0.b32.cont [4/16] %v756, 128
        %829 = vxpose.xlu0.b32.cont [5/16] 0.0, 128
        %830 = vxpose.xlu0.b32.cont [6/16] 0.0, 128
        %831 = vxpose.xlu0.b32.cont [7/16] 0.0, 128
        %832 = vxpose.xlu0.b32.cont [8/16] 0.0, 128
        %833 = vxpose.xlu0.b32.cont [9/16] 0.0, 128
        %834 = vxpose.xlu0.b32.cont [10/16] 0.0, 128
        %835 = vxpose.xlu0.b32.cont [11/16] 0.0, 128
        %836 = vxpose.xlu0.b32.cont [12/16] 0.0, 128
        %837 = vxpose.xlu0.b32.cont [13/16] 0.0, 128
        %838 = vxpose.xlu0.b32.cont [14/16] 0.0, 128
        %839 = vxpose.xlu0.b32.cont [15/16] 0.0, 128
        %840 = vxpose.xlu0.b32.end [16/16] 0.0, 128
        %v841 = vpop.trf.xlu0
        %v842 = vpop.trf.xlu0
        %v843 = vpop.trf.xlu0
        %v844 = vpop.trf.xlu0
        %v845 = vpop.trf.xlu0
        %v846 = vpop.trf.xlu0
        %v847 = vpop.trf.xlu0
        %v848 = vpop.trf.xlu0
        %v849 = vpop.trf.xlu0
        %v850 = vpop.trf.xlu0
        %v851 = vpop.trf.xlu0
        %v852 = vpop.trf.xlu0
        %v853 = vpop.trf.xlu0
        %v854 = vpop.trf.xlu0
        %v855 = vpop.trf.xlu0
        %v856 = vpop.trf.xlu0
        %857 = vxpose.xlu0.b32.start [1/16] %v757, 128
        %858 = vxpose.xlu0.b32.cont [2/16] %v758, 128
        %859 = vxpose.xlu0.b32.cont [3/16] %v759, 128
        %860 = vxpose.xlu0.b32.cont [4/16] %v760, 128
        %861 = vxpose.xlu0.b32.cont [5/16] 0.0, 128
        %862 = vxpose.xlu0.b32.cont [6/16] 0.0, 128
        %863 = vxpose.xlu0.b32.cont [7/16] 0.0, 128
        %864 = vxpose.xlu0.b32.cont [8/16] 0.0, 128
        %865 = vxpose.xlu0.b32.cont [9/16] 0.0, 128
        %866 = vxpose.xlu0.b32.cont [10/16] 0.0, 128
        %867 = vxpose.xlu0.b32.cont [11/16] 0.0, 128
        %868 = vxpose.xlu0.b32.cont [12/16] 0.0, 128
        %869 = vxpose.xlu0.b32.cont [13/16] 0.0, 128
        %870 = vxpose.xlu0.b32.cont [14/16] 0.0, 128
        %871 = vxpose.xlu0.b32.cont [15/16] 0.0, 128
        %872 = vxpose.xlu0.b32.end [16/16] 0.0, 128
        %v873 = vpop.trf.xlu0
        %v874 = vpop.trf.xlu0
        %v875 = vpop.trf.xlu0
        %v876 = vpop.trf.xlu0
        %v877 = vpop.trf.xlu0
        %v878 = vpop.trf.xlu0
        %v879 = vpop.trf.xlu0
        %v880 = vpop.trf.xlu0
        %v881 = vpop.trf.xlu0
        %v882 = vpop.trf.xlu0
        %v883 = vpop.trf.xlu0
        %v884 = vpop.trf.xlu0
        %v885 = vpop.trf.xlu0
        %v886 = vpop.trf.xlu0
        %v887 = vpop.trf.xlu0
        %v888 = vpop.trf.xlu0
        %v890 = vsel %vm707, %v777, 0
        %v893 = vsel %vm707, %v778, 0
        %v896 = vsel %vm707, %v779, 0
        %v899 = vsel %vm707, %v809, 0
        %v902 = vsel %vm707, %v810, 0
        %v905 = vsel %vm707, %v811, 0
        %v908 = vsel %vm707, %v841, 0
        %v911 = vsel %vm707, %v842, 0
        %v914 = vsel %vm707, %v843, 0
        %v917 = vsel %vm707, %v873, 0
        %v920 = vsel %vm707, %v874, 0
        %v923 = vsel %vm707, %v875, 0
        %v926 = vsel %vm707, %v744, 0
        %928 = vmatpush.xpose.msra.mxu0 0.0
        %929 = vmatpush.xpose.msra.mxu0 0.0
        %930 = vmatpush.xpose.msra.mxu0 0.0
        %931 = vmatpush.xpose.msra.mxu0 0.0
        %932 = vmatpush.xpose.msra.mxu0 0.0
        %933 = vmatpush.xpose.msra.mxu0 0.0
        %934 = vmatpush.xpose.msra.mxu0 0.0
        %935 = vmatpush.xpose.msra.mxu0 0.0
        %936 = vmatpush.xpose.msra.mxu0 0.0
        %937 = vmatpush.xpose.msra.mxu0 0.0
        %938 = vmatpush.xpose.msra.mxu0 0.0
        %939 = vmatpush.xpose.msra.mxu0 0.0
        %940 = vmatpush.xpose.msra.mxu0 0.0
        %941 = vmatpush.xpose.msra.mxu0 0.0
        %942 = vmatpush.xpose.msra.mxu0 0.0
        %943 = vmatpush.xpose.msra.mxu0 %v926
        %944 = vmatmul.f32.gmra.mxu0 %v890
        %v945 = vpop.f32.mrf.mxu0
        %v946 = vadd.f32 0.0, %v945
        %947 = vmatmul.f32.gmra.mxu0 %v893
        %v948 = vpop.f32.mrf.mxu0
        %v949 = vadd.f32 0.0, %v948
        %950 = vmatmul.f32.gmra.mxu0 %v896
        %v951 = vpop.f32.mrf.mxu0
        %v952 = vadd.f32 0.0, %v951
        %953 = vmatmul.f32.gmra.mxu0 %v899
        %v954 = vpop.f32.mrf.mxu0
        %v955 = vadd.f32 0.0, %v954
        %956 = vmatmul.f32.gmra.mxu0 %v902
        %v957 = vpop.f32.mrf.mxu0
        %v958 = vadd.f32 0.0, %v957
        %959 = vmatmul.f32.gmra.mxu0 %v905
        %v960 = vpop.f32.mrf.mxu0
        %v961 = vadd.f32 0.0, %v960
        %962 = vmatmul.f32.gmra.mxu0 %v908
        %v963 = vpop.f32.mrf.mxu0
        %v964 = vadd.f32 0.0, %v963
        %965 = vmatmul.f32.gmra.mxu0 %v911
        %v966 = vpop.f32.mrf.mxu0
        %v967 = vadd.f32 0.0, %v966
        %968 = vmatmul.f32.gmra.mxu0 %v914
        %v969 = vpop.f32.mrf.mxu0
        %v970 = vadd.f32 0.0, %v969
        %971 = vmatmul.f32.gmra.mxu0 %v917
        %v972 = vpop.f32.mrf.mxu0
        %v973 = vadd.f32 0.0, %v972
        %974 = vmatmul.f32.gmra.mxu0 %v920
        %v975 = vpop.f32.mrf.mxu0
        %v976 = vadd.f32 0.0, %v975
        %977 = vmatmul.f32.gmra.mxu0 %v923
        %v978 = vpop.f32.mrf.mxu0
        %v979 = vadd.f32 0.0, %v978
        %980 = vdwg.mxu0
        %981 = vxpose.xlu0.b32.start [1/16] %v946, 128
        %982 = vxpose.xlu0.b32.cont [2/16] %v949, 128
        %983 = vxpose.xlu0.b32.cont [3/16] %v952, 128
        %984 = vxpose.xlu0.b32.cont [4/16] 0.0, 128
        %985 = vxpose.xlu0.b32.cont [5/16] 0.0, 128
        %986 = vxpose.xlu0.b32.cont [6/16] 0.0, 128
        %987 = vxpose.xlu0.b32.cont [7/16] 0.0, 128
        %988 = vxpose.xlu0.b32.cont [8/16] 0.0, 128
        %989 = vxpose.xlu0.b32.cont [9/16] 0.0, 128
        %990 = vxpose.xlu0.b32.cont [10/16] 0.0, 128
        %991 = vxpose.xlu0.b32.cont [11/16] 0.0, 128
        %992 = vxpose.xlu0.b32.cont [12/16] 0.0, 128
        %993 = vxpose.xlu0.b32.cont [13/16] 0.0, 128
        %994 = vxpose.xlu0.b32.cont [14/16] 0.0, 128
        %995 = vxpose.xlu0.b32.cont [15/16] 0.0, 128
        %996 = vxpose.xlu0.b32.end [16/16] 0.0, 128
        %v997 = vpop.trf.xlu0
        %v998 = vpop.trf.xlu0
        %v999 = vpop.trf.xlu0
        %v1000 = vpop.trf.xlu0
        %v1001 = vpop.trf.xlu0
        %v1002 = vpop.trf.xlu0
        %v1003 = vpop.trf.xlu0
        %v1004 = vpop.trf.xlu0
        %v1005 = vpop.trf.xlu0
        %v1006 = vpop.trf.xlu0
        %v1007 = vpop.trf.xlu0
        %v1008 = vpop.trf.xlu0
        %v1009 = vpop.trf.xlu0
        %v1010 = vpop.trf.xlu0
        %v1011 = vpop.trf.xlu0
        %v1012 = vpop.trf.xlu0
        %1013 = vxpose.xlu0.b32.start [1/16] %v955, 128
        %1014 = vxpose.xlu0.b32.cont [2/16] %v958, 128
        %1015 = vxpose.xlu0.b32.cont [3/16] %v961, 128
        %1016 = vxpose.xlu0.b32.cont [4/16] 0.0, 128
        %1017 = vxpose.xlu0.b32.cont [5/16] 0.0, 128
        %1018 = vxpose.xlu0.b32.cont [6/16] 0.0, 128
        %1019 = vxpose.xlu0.b32.cont [7/16] 0.0, 128
        %1020 = vxpose.xlu0.b32.cont [8/16] 0.0, 128
        %1021 = vxpose.xlu0.b32.cont [9/16] 0.0, 128
        %1022 = vxpose.xlu0.b32.cont [10/16] 0.0, 128
        %1023 = vxpose.xlu0.b32.cont [11/16] 0.0, 128
        %1024 = vxpose.xlu0.b32.cont [12/16] 0.0, 128
        %1025 = vxpose.xlu0.b32.cont [13/16] 0.0, 128
        %1026 = vxpose.xlu0.b32.cont [14/16] 0.0, 128
        %1027 = vxpose.xlu0.b32.cont [15/16] 0.0, 128
        %1028 = vxpose.xlu0.b32.end [16/16] 0.0, 128
        %v1029 = vpop.trf.xlu0
        %v1030 = vpop.trf.xlu0
        %v1031 = vpop.trf.xlu0
        %v1032 = vpop.trf.xlu0
        %v1033 = vpop.trf.xlu0
        %v1034 = vpop.trf.xlu0
        %v1035 = vpop.trf.xlu0
        %v1036 = vpop.trf.xlu0
        %v1037 = vpop.trf.xlu0
        %v1038 = vpop.trf.xlu0
        %v1039 = vpop.trf.xlu0
        %v1040 = vpop.trf.xlu0
        %v1041 = vpop.trf.xlu0
        %v1042 = vpop.trf.xlu0
        %v1043 = vpop.trf.xlu0
        %v1044 = vpop.trf.xlu0
        %1045 = vxpose.xlu0.b32.start [1/16] %v964, 128
        %1046 = vxpose.xlu0.b32.cont [2/16] %v967, 128
        %1047 = vxpose.xlu0.b32.cont [3/16] %v970, 128
        %1048 = vxpose.xlu0.b32.cont [4/16] 0.0, 128
        %1049 = vxpose.xlu0.b32.cont [5/16] 0.0, 128
        %1050 = vxpose.xlu0.b32.cont [6/16] 0.0, 128
        %1051 = vxpose.xlu0.b32.cont [7/16] 0.0, 128
        %1052 = vxpose.xlu0.b32.cont [8/16] 0.0, 128
        %1053 = vxpose.xlu0.b32.cont [9/16] 0.0, 128
        %1054 = vxpose.xlu0.b32.cont [10/16] 0.0, 128
        %1055 = vxpose.xlu0.b32.cont [11/16] 0.0, 128
        %1056 = vxpose.xlu0.b32.cont [12/16] 0.0, 128
        %1057 = vxpose.xlu0.b32.cont [13/16] 0.0, 128
        %1058 = vxpose.xlu0.b32.cont [14/16] 0.0, 128
        %1059 = vxpose.xlu0.b32.cont [15/16] 0.0, 128
        %1060 = vxpose.xlu0.b32.end [16/16] 0.0, 128
        %v1061 = vpop.trf.xlu0
        %v1062 = vpop.trf.xlu0
        %v1063 = vpop.trf.xlu0
        %v1064 = vpop.trf.xlu0
        %v1065 = vpop.trf.xlu0
        %v1066 = vpop.trf.xlu0
        %v1067 = vpop.trf.xlu0
        %v1068 = vpop.trf.xlu0
        %v1069 = vpop.trf.xlu0
        %v1070 = vpop.trf.xlu0
        %v1071 = vpop.trf.xlu0
        %v1072 = vpop.trf.xlu0
        %v1073 = vpop.trf.xlu0
        %v1074 = vpop.trf.xlu0
        %v1075 = vpop.trf.xlu0
        %v1076 = vpop.trf.xlu0
        %1077 = vxpose.xlu0.b32.start [1/16] %v973, 128
        %1078 = vxpose.xlu0.b32.cont [2/16] %v976, 128
        %1079 = vxpose.xlu0.b32.cont [3/16] %v979, 128
        %1080 = vxpose.xlu0.b32.cont [4/16] 0.0, 128
        %1081 = vxpose.xlu0.b32.cont [5/16] 0.0, 128
        %1082 = vxpose.xlu0.b32.cont [6/16] 0.0, 128
        %1083 = vxpose.xlu0.b32.cont [7/16] 0.0, 128
        %1084 = vxpose.xlu0.b32.cont [8/16] 0.0, 128
        %1085 = vxpose.xlu0.b32.cont [9/16] 0.0, 128
        %1086 = vxpose.xlu0.b32.cont [10/16] 0.0, 128
        %1087 = vxpose.xlu0.b32.cont [11/16] 0.0, 128
        %1088 = vxpose.xlu0.b32.cont [12/16] 0.0, 128
        %1089 = vxpose.xlu0.b32.cont [13/16] 0.0, 128
        %1090 = vxpose.xlu0.b32.cont [14/16] 0.0, 128
        %1091 = vxpose.xlu0.b32.cont [15/16] 0.0, 128
        %1092 = vxpose.xlu0.b32.end [16/16] 0.0, 128
        %v1093 = vpop.trf.xlu0
        %v1094 = vpop.trf.xlu0
        %v1095 = vpop.trf.xlu0
        %v1096 = vpop.trf.xlu0
        %v1097 = vpop.trf.xlu0
        %v1098 = vpop.trf.xlu0
        %v1099 = vpop.trf.xlu0
        %v1100 = vpop.trf.xlu0
        %v1101 = vpop.trf.xlu0
        %v1102 = vpop.trf.xlu0
        %v1103 = vpop.trf.xlu0
        %v1104 = vpop.trf.xlu0
        %v1105 = vpop.trf.xlu0
        %v1106 = vpop.trf.xlu0
        %v1107 = vpop.trf.xlu0
        %v1108 = vpop.trf.xlu0
        %v1109 = vld [vmem:[%s666] sm:$0x1]
        %v1110 = vld [vmem:[%s666 + $0x1] sm:$0x1]
        %v1111 = vld [vmem:[%s666 + $0x2] sm:$0x1]
        %v1112 = vld [vmem:[%s666 + $0x3] sm:$0x1]
        %v1117 = vperm.slane %v1109, 0
        %v1118 = vperm.slane %v1110, 0
        %v1119 = vperm.slane %v1111, 0
        %v1120 = vperm.slane %v1112, 0
        %v1125 = vadd.f32 %v997, %v1117
        %v1126 = vadd.f32 %v1029, %v1118
        %v1127 = vadd.f32 %v1061, %v1119
        %v1128 = vadd.f32 %v1093, %v1120
        %1130 = vrot.lane.b32.xlu0 %v1125, 120
        %v1131 = vpop.permute.xlu0 %1130
        %vm1132 = vcmask 64512
        %v1133 = vsel %vm1132, %v1125, 0
        %v1135 = vsel %vm1132, %v1131, 0
        %1137 = vmatpush.xpose.msra.mxu0 0.0
        %1138 = vmatpush.xpose.msra.mxu0 0.0
        %1139 = vmatpush.xpose.msra.mxu0 0.0
        %1140 = vmatpush.xpose.msra.mxu0 0.0
        %1141 = vmatpush.xpose.msra.mxu0 0.0
        %1142 = vmatpush.xpose.msra.mxu0 0.0
        %1143 = vmatpush.xpose.msra.mxu0 0.0
        %1144 = vmatpush.xpose.msra.mxu0 0.0
        %1145 = vmatpush.xpose.msra.mxu0 0.0
        %1146 = vmatpush.xpose.msra.mxu0 0.0
        %1147 = vmatpush.xpose.msra.mxu0 0.0
        %1148 = vmatpush.xpose.msra.mxu0 0.0
        %1149 = vmatpush.xpose.msra.mxu0 0.0
        %1150 = vmatpush.xpose.msra.mxu0 0.0
        %1151 = vmatpush.xpose.msra.mxu0 0.0
        %1152 = vmatpush.xpose.msra.mxu0 %v1135
        %1153 = vmatmul.f32.gmra.mxu0 %v1133
        %v1154 = vpop.f32.mrf.mxu0
        %v1155 = vadd.f32 0.0, %v1154
        %1156 = vdwg.mxu0
        %1158 = vrot.lane.b32.xlu0 %v1126, 120
        %v1159 = vpop.permute.xlu0 %1158
        %v1160 = vsel %vm1132, %v1126, 0
        %v1162 = vsel %vm1132, %v1159, 0
        %1164 = vmatpush.xpose.msra.mxu0 0.0
        %1165 = vmatpush.xpose.msra.mxu0 0.0
        %1166 = vmatpush.xpose.msra.mxu0 0.0
        %1167 = vmatpush.xpose.msra.mxu0 0.0
        %1168 = vmatpush.xpose.msra.mxu0 0.0
        %1169 = vmatpush.xpose.msra.mxu0 0.0
        %1170 = vmatpush.xpose.msra.mxu0 0.0
        %1171 = vmatpush.xpose.msra.mxu0 0.0
        %1172 = vmatpush.xpose.msra.mxu0 0.0
        %1173 = vmatpush.xpose.msra.mxu0 0.0
        %1174 = vmatpush.xpose.msra.mxu0 0.0
        %1175 = vmatpush.xpose.msra.mxu0 0.0
        %1176 = vmatpush.xpose.msra.mxu0 0.0
        %1177 = vmatpush.xpose.msra.mxu0 0.0
        %1178 = vmatpush.xpose.msra.mxu0 0.0
        %1179 = vmatpush.xpose.msra.mxu0 %v1162
        %1180 = vmatmul.f32.gmra.mxu0 %v1160
        %v1181 = vpop.f32.mrf.mxu0
        %v1182 = vadd.f32 0.0, %v1181
        %1183 = vdwg.mxu0
        %1185 = vrot.lane.b32.xlu0 %v1127, 120
        %v1186 = vpop.permute.xlu0 %1185
        %v1187 = vsel %vm1132, %v1127, 0
        %v1189 = vsel %vm1132, %v1186, 0
        %1191 = vmatpush.xpose.msra.mxu0 0.0
        %1192 = vmatpush.xpose.msra.mxu0 0.0
        %1193 = vmatpush.xpose.msra.mxu0 0.0
        %1194 = vmatpush.xpose.msra.mxu0 0.0
        %1195 = vmatpush.xpose.msra.mxu0 0.0
        %1196 = vmatpush.xpose.msra.mxu0 0.0
        %1197 = vmatpush.xpose.msra.mxu0 0.0
        %1198 = vmatpush.xpose.msra.mxu0 0.0
        %1199 = vmatpush.xpose.msra.mxu0 0.0
        %1200 = vmatpush.xpose.msra.mxu0 0.0
        %1201 = vmatpush.xpose.msra.mxu0 0.0
        %1202 = vmatpush.xpose.msra.mxu0 0.0
        %1203 = vmatpush.xpose.msra.mxu0 0.0
        %1204 = vmatpush.xpose.msra.mxu0 0.0
        %1205 = vmatpush.xpose.msra.mxu0 0.0
        %1206 = vmatpush.xpose.msra.mxu0 %v1189
        %1207 = vmatmul.f32.gmra.mxu0 %v1187
        %v1208 = vpop.f32.mrf.mxu0
        %v1209 = vadd.f32 0.0, %v1208
        %1210 = vdwg.mxu0
        %1212 = vrot.lane.b32.xlu0 %v1128, 120
        %v1213 = vpop.permute.xlu0 %1212
        %v1214 = vsel %vm1132, %v1128, 0
        %v1216 = vsel %vm1132, %v1213, 0
        %1218 = vmatpush.xpose.msra.mxu0 0.0
        %1219 = vmatpush.xpose.msra.mxu0 0.0
        %1220 = vmatpush.xpose.msra.mxu0 0.0
        %1221 = vmatpush.xpose.msra.mxu0 0.0
        %1222 = vmatpush.xpose.msra.mxu0 0.0
        %1223 = vmatpush.xpose.msra.mxu0 0.0
        %1224 = vmatpush.xpose.msra.mxu0 0.0
        %1225 = vmatpush.xpose.msra.mxu0 0.0
        %1226 = vmatpush.xpose.msra.mxu0 0.0
        %1227 = vmatpush.xpose.msra.mxu0 0.0
        %1228 = vmatpush.xpose.msra.mxu0 0.0
        %1229 = vmatpush.xpose.msra.mxu0 0.0
        %1230 = vmatpush.xpose.msra.mxu0 0.0
        %1231 = vmatpush.xpose.msra.mxu0 0.0
        %1232 = vmatpush.xpose.msra.mxu0 0.0
        %1233 = vmatpush.xpose.msra.mxu0 %v1216
        %1234 = vmatmul.f32.gmra.mxu0 %v1214
        %v1235 = vpop.f32.mrf.mxu0
        %v1236 = vadd.f32 0.0, %v1235
        %1237 = vdwg.mxu0
        %v1238 = vsel %vm1132, %v1155, -inf
        %1239 = vmax.xlane.f32.xlu0 %v1238
        %v1240 = vpop.xlane.xlu0 %1239
        %v1241 = vsel %vm1132, %v1182, -inf
        %1242 = vmax.xlane.f32.xlu0 %v1241
        %v1243 = vpop.xlane.xlu0 %1242
        %v1244 = vsel %vm1132, %v1209, -inf
        %1245 = vmax.xlane.f32.xlu0 %v1244
        %v1246 = vpop.xlane.xlu0 %1245
        %v1247 = vsel %vm1132, %v1236, -inf
        %1248 = vmax.xlane.f32.xlu0 %v1247
        %v1249 = vpop.xlane.xlu0 %1248
        %v1250 = vsub.f32 %v1155, %v1240
        %v1251 = vsub.f32 %v1182, %v1243
        %v1252 = vsub.f32 %v1209, %v1246
        %v1253 = vsub.f32 %v1236, %v1249
        %v1254 = vmul.f32 %v1250, 1.442695
        %v1255 = vpow.pop %v1254
        %v1256 = vmul.f32 %v1251, 1.442695
        %v1257 = vpow.pop %v1256
        %v1258 = vmul.f32 %v1252, 1.442695
        %v1259 = vpow.pop %v1258
        %v1260 = vmul.f32 %v1253, 1.442695
        %v1261 = vpow.pop %v1260
        %v1262 = vsel %vm1132, %v1255, 0.0
        %1263 = vadd.xlane.f32.xlu0 %v1262
        %v1264 = vpop.xlane.xlu0 %1263
        %v1265 = vsel %vm1132, %v1257, 0.0
        %1266 = vadd.xlane.f32.xlu0 %v1265
        %v1267 = vpop.xlane.xlu0 %1266
        %v1268 = vsel %vm1132, %v1259, 0.0
        %1269 = vadd.xlane.f32.xlu0 %v1268
        %v1270 = vpop.xlane.xlu0 %1269
        %v1271 = vsel %vm1132, %v1261, 0.0
        %1272 = vadd.xlane.f32.xlu0 %v1271
        %v1273 = vpop.xlane.xlu0 %1272
        %v1274 = vrcp.pop %v1264
        %v1275 = vrcp.pop %v1267
        %v1276 = vrcp.pop %v1270
        %v1277 = vrcp.pop %v1273
        %v1278 = vmul.f32 %v1255, %v1274
        %v1279 = vmul.f32 %v1257, %v1275
        %v1280 = vmul.f32 %v1259, %v1276
        %v1281 = vmul.f32 %v1261, %v1277
        %1282 = vrot.lane.b32.xlu0 %v1125, 112
        %v1283 = vpop.permute.xlu0 %1282
        %v1286 = vsel %vm1132, %v1278, 0
        %1288 = vmatpush.msra.mxu0 0.0
        %1289 = vmatpush.msra.mxu0 0.0
        %1290 = vmatpush.msra.mxu0 0.0
        %1291 = vmatpush.msra.mxu0 0.0
        %1292 = vmatpush.msra.mxu0 0.0
        %1293 = vmatpush.msra.mxu0 0.0
        %1294 = vmatpush.msra.mxu0 0.0
        %1295 = vmatpush.msra.mxu0 0.0
        %1296 = vmatpush.msra.mxu0 0.0
        %1297 = vmatpush.msra.mxu0 0.0
        %1298 = vmatpush.msra.mxu0 0.0
        %1299 = vmatpush.msra.mxu0 0.0
        %1300 = vmatpush.msra.mxu0 0.0
        %1301 = vmatpush.msra.mxu0 0.0
        %1302 = vmatpush.msra.mxu0 0.0
        %1303 = vmatpush.msra.mxu0 %v1283
        %1304 = vmatmul.f32.gmra.mxu0 %v1286
        %v1305 = vpop.f32.mrf.mxu0
        %v1306 = vadd.f32 0.0, %v1305
        %1307 = vdwg.mxu0
        %1308 = vrot.lane.b32.xlu0 %v1126, 112
        %v1309 = vpop.permute.xlu0 %1308
        %v1312 = vsel %vm1132, %v1279, 0
        %1314 = vmatpush.msra.mxu0 0.0
        %1315 = vmatpush.msra.mxu0 0.0
        %1316 = vmatpush.msra.mxu0 0.0
        %1317 = vmatpush.msra.mxu0 0.0
        %1318 = vmatpush.msra.mxu0 0.0
        %1319 = vmatpush.msra.mxu0 0.0
        %1320 = vmatpush.msra.mxu0 0.0
        %1321 = vmatpush.msra.mxu0 0.0
        %1322 = vmatpush.msra.mxu0 0.0
        %1323 = vmatpush.msra.mxu0 0.0
        %1324 = vmatpush.msra.mxu0 0.0
        %1325 = vmatpush.msra.mxu0 0.0
        %1326 = vmatpush.msra.mxu0 0.0
        %1327 = vmatpush.msra.mxu0 0.0
        %1328 = vmatpush.msra.mxu0 0.0
        %1329 = vmatpush.msra.mxu0 %v1309
        %1330 = vmatmul.f32.gmra.mxu0 %v1312
        %v1331 = vpop.f32.mrf.mxu0
        %v1332 = vadd.f32 0.0, %v1331
        %1333 = vdwg.mxu0
        %1334 = vrot.lane.b32.xlu0 %v1127, 112
        %v1335 = vpop.permute.xlu0 %1334
        %v1338 = vsel %vm1132, %v1280, 0
        %1340 = vmatpush.msra.mxu0 0.0
        %1341 = vmatpush.msra.mxu0 0.0
        %1342 = vmatpush.msra.mxu0 0.0
        %1343 = vmatpush.msra.mxu0 0.0
        %1344 = vmatpush.msra.mxu0 0.0
        %1345 = vmatpush.msra.mxu0 0.0
        %1346 = vmatpush.msra.mxu0 0.0
        %1347 = vmatpush.msra.mxu0 0.0
        %1348 = vmatpush.msra.mxu0 0.0
        %1349 = vmatpush.msra.mxu0 0.0
        %1350 = vmatpush.msra.mxu0 0.0
        %1351 = vmatpush.msra.mxu0 0.0
        %1352 = vmatpush.msra.mxu0 0.0
        %1353 = vmatpush.msra.mxu0 0.0
        %1354 = vmatpush.msra.mxu0 0.0
        %1355 = vmatpush.msra.mxu0 %v1335
        %1356 = vmatmul.f32.gmra.mxu0 %v1338
        %v1357 = vpop.f32.mrf.mxu0
        %v1358 = vadd.f32 0.0, %v1357
        %1359 = vdwg.mxu0
        %1360 = vrot.lane.b32.xlu0 %v1128, 112
        %v1361 = vpop.permute.xlu0 %1360
        %v1364 = vsel %vm1132, %v1281, 0
        %1366 = vmatpush.msra.mxu0 0.0
        %1367 = vmatpush.msra.mxu0 0.0
        %1368 = vmatpush.msra.mxu0 0.0
        %1369 = vmatpush.msra.mxu0 0.0
        %1370 = vmatpush.msra.mxu0 0.0
        %1371 = vmatpush.msra.mxu0 0.0
        %1372 = vmatpush.msra.mxu0 0.0
        %1373 = vmatpush.msra.mxu0 0.0
        %1374 = vmatpush.msra.mxu0 0.0
        %1375 = vmatpush.msra.mxu0 0.0
        %1376 = vmatpush.msra.mxu0 0.0
        %1377 = vmatpush.msra.mxu0 0.0
        %1378 = vmatpush.msra.mxu0 0.0
        %1379 = vmatpush.msra.mxu0 0.0
        %1380 = vmatpush.msra.mxu0 0.0
        %1381 = vmatpush.msra.mxu0 %v1361
        %1382 = vmatmul.f32.gmra.mxu0 %v1364
        %v1383 = vpop.f32.mrf.mxu0
        %v1384 = vadd.f32 0.0, %v1383
        %1385 = vdwg.mxu0
        %v1386 = vld [vmem:[%s671] sm:$0xff]
        %v1387 = vld [vmem:[%s671 + $0x8] sm:$0xff]
        %v1388 = vld [vmem:[%s671 + $0x10] sm:$0xff]
        %v1389 = vld [vmem:[%s671 + $0x18] sm:$0xff]
        %v1391 = vsel %vm1132, %v1306, 0
        %1393 = vmatpush.msra.mxu0 0.0
        %1394 = vmatpush.msra.mxu0 0.0
        %1395 = vmatpush.msra.mxu0 0.0
        %1396 = vmatpush.msra.mxu0 0.0
        %1397 = vmatpush.msra.mxu0 0.0
        %1398 = vmatpush.msra.mxu0 0.0
        %1399 = vmatpush.msra.mxu0 0.0
        %1400 = vmatpush.msra.mxu0 0.0
        %1401 = vmatpush.msra.mxu0 0.0
        %1402 = vmatpush.msra.mxu0 0.0
        %1403 = vmatpush.msra.mxu0 0.0
        %1404 = vmatpush.msra.mxu0 0.0
        %1405 = vmatpush.msra.mxu0 0.0
        %1406 = vmatpush.msra.mxu0 0.0
        %1407 = vmatpush.msra.mxu0 0.0
        %1408 = vmatpush.msra.mxu0 %v1386
        %1409 = vmatmul.f32.gmra.mxu0 %v1391
        %v1410 = vpop.f32.mrf.mxu0
        %v1411 = vadd.f32 0.0, %v1410
        %1412 = vdwg.mxu0
        %v1414 = vsel %vm1132, %v1332, 0
        %1416 = vmatpush.msra.mxu0 0.0
        %1417 = vmatpush.msra.mxu0 0.0
        %1418 = vmatpush.msra.mxu0 0.0
        %1419 = vmatpush.msra.mxu0 0.0
        %1420 = vmatpush.msra.mxu0 0.0
        %1421 = vmatpush.msra.mxu0 0.0
        %1422 = vmatpush.msra.mxu0 0.0
        %1423 = vmatpush.msra.mxu0 0.0
        %1424 = vmatpush.msra.mxu0 0.0
        %1425 = vmatpush.msra.mxu0 0.0
        %1426 = vmatpush.msra.mxu0 0.0
        %1427 = vmatpush.msra.mxu0 0.0
        %1428 = vmatpush.msra.mxu0 0.0
        %1429 = vmatpush.msra.mxu0 0.0
        %1430 = vmatpush.msra.mxu0 0.0
        %1431 = vmatpush.msra.mxu0 %v1387
        %1432 = vmatmul.f32.gmra.mxu0 %v1414
        %v1433 = vpop.f32.mrf.mxu0
        %v1434 = vadd.f32 0.0, %v1433
        %1435 = vdwg.mxu0
        %v1437 = vsel %vm1132, %v1358, 0
        %1439 = vmatpush.msra.mxu0 0.0
        %1440 = vmatpush.msra.mxu0 0.0
        %1441 = vmatpush.msra.mxu0 0.0
        %1442 = vmatpush.msra.mxu0 0.0
        %1443 = vmatpush.msra.mxu0 0.0
        %1444 = vmatpush.msra.mxu0 0.0
        %1445 = vmatpush.msra.mxu0 0.0
        %1446 = vmatpush.msra.mxu0 0.0
        %1447 = vmatpush.msra.mxu0 0.0
        %1448 = vmatpush.msra.mxu0 0.0
        %1449 = vmatpush.msra.mxu0 0.0
        %1450 = vmatpush.msra.mxu0 0.0
        %1451 = vmatpush.msra.mxu0 0.0
        %1452 = vmatpush.msra.mxu0 0.0
        %1453 = vmatpush.msra.mxu0 0.0
        %1454 = vmatpush.msra.mxu0 %v1388
        %1455 = vmatmul.f32.gmra.mxu0 %v1437
        %v1456 = vpop.f32.mrf.mxu0
        %v1457 = vadd.f32 0.0, %v1456
        %1458 = vdwg.mxu0
        %v1460 = vsel %vm1132, %v1384, 0
        %1462 = vmatpush.msra.mxu0 0.0
        %1463 = vmatpush.msra.mxu0 0.0
        %1464 = vmatpush.msra.mxu0 0.0
        %1465 = vmatpush.msra.mxu0 0.0
        %1466 = vmatpush.msra.mxu0 0.0
        %1467 = vmatpush.msra.mxu0 0.0
        %1468 = vmatpush.msra.mxu0 0.0
        %1469 = vmatpush.msra.mxu0 0.0
        %1470 = vmatpush.msra.mxu0 0.0
        %1471 = vmatpush.msra.mxu0 0.0
        %1472 = vmatpush.msra.mxu0 0.0
        %1473 = vmatpush.msra.mxu0 0.0
        %1474 = vmatpush.msra.mxu0 0.0
        %1475 = vmatpush.msra.mxu0 0.0
        %1476 = vmatpush.msra.mxu0 0.0
        %1477 = vmatpush.msra.mxu0 %v1389
        %1478 = vmatmul.f32.gmra.mxu0 %v1460
        %v1479 = vpop.f32.mrf.mxu0
        %v1480 = vadd.f32 0.0, %v1479
        %1481 = vdwg.mxu0
        %v1482 = vsel %vm707, %v1411, 0.0
        %v1483 = vsel %vm707, %v1434, 0.0
        %v1484 = vadd.f32 %v1482, %v1483
        %v1485 = vsel %vm707, %v1457, 0.0
        %v1486 = vadd.f32 %v1484, %v1485
        %v1487 = vsel %vm707, %v1480, 0.0
        %v1488 = vadd.f32 %v1486, %v1487
        %v1489 = vld [vmem:[%s674] sm:$0x1]
        %v1491 = vperm.slane %v1489, 0
        %v1493 = vadd.f32 %v1488, %v1491
        %v1494 = vadd.f32 %v704, %v1493
        %v1495 = vld [vmem:[%s677] sm:$0x1]
        %v1496 = vld [vmem:[%s680] sm:$0x1]
        %v1497 = vsel %vm707, %v1494, 0.0
        %1498 = vadd.xlane.f32.xlu0 %v1497
        %v1499 = vpop.xlane.xlu0 %1498
        %v1500 = vmul.f32 %v1499, %v717
        %v1501 = vsub.f32 %v1494, %v1500
        %v1502 = vmul.f32 %v1501, %v1501
        %v1503 = vsel %vm707, %v1502, 0.0
        %1504 = vadd.xlane.f32.xlu0 %v1503
        %v1505 = vpop.xlane.xlu0 %1504
        %v1506 = vmul.f32 %v1505, %v717
        %v1507 = vadd.f32 %v1506, 1e-05
        %v1508 = vrsqrt.pop %v1507
        %v1509 = vmul.f32 %v1508, %v1507
        %v1510 = vmul.f32 %v1509, %v1508
        %v1511 = vmul.f32 0.5, %v1510
        %v1512 = vsub.f32 1.5, %v1511
        %v1513 = vmul.f32 %v1508, %v1512
        %vm1514 = vweird.f32 %v1507
        %vm1515 = vweird.f32 %v1508
        %vm1516 = vmor %vm1514, %vm1515
        %v1517 = vsel %vm1516, %v1508, %v1513
        %v1518 = vmul.f32 %v1501, %v1517
        %v1520 = vperm.slane %v1495, 0
        %v1522 = vmul.f32 %v1518, %v1520
        %v1524 = vperm.slane %v1496, 0
        %v1526 = vadd.f32 %v1522, %v1524
        %v1527 = vld [vmem:[%s685] sm:$0xff]
        %v1528 = vld [vmem:[%s685 + $0x8] sm:$0xff]
        %v1529 = vld [vmem:[%s685 + $0x10] sm:$0xff]
        %v1530 = vld [vmem:[%s685 + $0x18] sm:$0xff]
        %v1531 = vld [vmem:[%s688] sm:$0x1]
        %v1533 = vperm.slane %v1531, 0
        %v1536 = vsel %vm707, %v1526, 0
        %1538 = vmatpush.msra.mxu0 0.0
        %1539 = vmatpush.msra.mxu0 0.0
        %1540 = vmatpush.msra.mxu0 0.0
        %1541 = vmatpush.msra.mxu0 0.0
        %1542 = vmatpush.msra.mxu0 0.0
        %1543 = vmatpush.msra.mxu0 0.0
        %1544 = vmatpush.msra.mxu0 0.0
        %1545 = vmatpush.msra.mxu0 0.0
        %1546 = vmatpush.msra.mxu0 0.0
        %1547 = vmatpush.msra.mxu0 0.0
        %1548 = vmatpush.msra.mxu0 0.0
        %1549 = vmatpush.msra.mxu0 0.0
        %1550 = vmatpush.msra.mxu0 %v1530
        %1551 = vmatpush.msra.mxu0 %v1529
        %1552 = vmatpush.msra.mxu0 %v1528
        %1553 = vmatpush.msra.mxu0 %v1527
        %1554 = vmatmul.f32.gmra.mxu0 %v1536
        %v1555 = vpop.f32.mrf.mxu0
        %v1556 = vadd.f32 %v1533, %v1555
        %1557 = vdwg.mxu0
        %v1558 = vmul.f32 %v1556, %v1556
        %v1559 = vmul.f32 %v1556, %v1558
        %v1560 = vmul.f32 %v1559, 0.044715
        %v1561 = vadd.f32 %v1556, %v1560
        %v1562 = vmul.f32 %v1561, 0.7978846
        %v1563 = vtanh.pop %v1562
        %v1564 = vadd.f32 %v1563, 1.0
        %v1565 = vmul.f32 %v1564, 0.5
        %v1566 = vmul.f32 %v1556, %v1565
        %v1567 = vld [vmem:[%s693] sm:$0xff]
        %v1568 = vld [vmem:[%s693 + $0x8] sm:$0xff]
        %v1569 = vld [vmem:[%s693 + $0x10] sm:$0xff]
        %v1570 = vld [vmem:[%s693 + $0x18] sm:$0xff]
        %v1571 = vld [vmem:[%s693 + $0x20] sm:$0xff]
        %v1572 = vld [vmem:[%s693 + $0x28] sm:$0xff]
        %v1573 = vld [vmem:[%s693 + $0x30] sm:$0xff]
        %v1574 = vld [vmem:[%s693 + $0x38] sm:$0xff]
        %v1575 = vld [vmem:[%s696] sm:$0x1]
        %v1577 = vperm.slane %v1575, 0
        %vm1579 = vcmask 523264
        %v1581 = vsel %vm1579, %v1566, 0
        %1583 = vmatpush.msra.mxu0 0.0
        %1584 = vmatpush.msra.mxu0 0.0
        %1585 = vmatpush.msra.mxu0 0.0
        %1586 = vmatpush.msra.mxu0 0.0
        %1587 = vmatpush.msra.mxu0 0.0
        %1588 = vmatpush.msra.mxu0 0.0
        %1589 = vmatpush.msra.mxu0 0.0
        %1590 = vmatpush.msra.mxu0 0.0
        %1591 = vmatpush.msra.mxu0 %v1574
        %1592 = vmatpush.msra.mxu0 %v1573
        %1593 = vmatpush.msra.mxu0 %v1572
        %1594 = vmatpush.msra.mxu0 %v1571
        %1595 = vmatpush.msra.mxu0 %v1570
        %1596 = vmatpush.msra.mxu0 %v1569
        %1597 = vmatpush.msra.mxu0 %v1568
        %1598 = vmatpush.msra.mxu0 %v1567
        %1599 = vmatmul.f32.gmra.mxu0 %v1581
        %v1600 = vpop.f32.mrf.mxu0
        %v1601 = vadd.f32 %v1577, %v1600
        %1602 = vdwg.mxu0
        %v1603 = vadd.f32 %v1494, %v1601
        %1604 = vst.msk [vmem:[#allocation2] sm:$0xff] %vm707, %v1603
        %p1605 = scmp.eq.s32.totalorder %s34, 1
        // Predicated region
        $region85: #{tpu_custom_call.1} parent=79 // pred_check
          %p1606 = pneg %p1605
        $region86: #{tpu_custom_call.1} parent=79 // pred_check_branch
          %1608 = sbr.rel (%p1606) target = $region88
        $region87: #{tpu_custom_call.1} parent=79 // pred_region
          %v1609 = vld [vmem:[%s13] sm:$0x1]
          %v1610 = vld [vmem:[%s14] sm:$0x1]
          %v1611 = vsel %vm707, %v1603, 0.0
          %1612 = vadd.xlane.f32.xlu0 %v1611
          %v1613 = vpop.xlane.xlu0 %1612
          %v1614 = vmul.f32 %v1613, %v717
          %v1615 = vsub.f32 %v1603, %v1614
          %v1616 = vmul.f32 %v1615, %v1615
          %v1617 = vsel %vm707, %v1616, 0.0
          %1618 = vadd.xlane.f32.xlu0 %v1617
          %v1619 = vpop.xlane.xlu0 %1618
          %v1620 = vmul.f32 %v1619, %v717
          %v1621 = vadd.f32 %v1620, 1e-05
          %v1622 = vrsqrt.pop %v1621
          %v1623 = vmul.f32 %v1622, %v1621
          %v1624 = vmul.f32 %v1623, %v1622
          %v1625 = vmul.f32 0.5, %v1624
          %v1626 = vsub.f32 1.5, %v1625
          %v1627 = vmul.f32 %v1622, %v1626
          %vm1628 = vweird.f32 %v1621
          %vm1629 = vweird.f32 %v1622
          %vm1630 = vmor %vm1628, %vm1629
          %v1631 = vsel %vm1630, %v1622, %v1627
          %v1632 = vmul.f32 %v1615, %v1631
          %v1634 = vperm.slane %v1609, 0
          %v1636 = vmul.f32 %v1632, %v1634
          %v1638 = vperm.slane %v1610, 0
          %v1640 = vadd.f32 %v1636, %v1638
          %1641 = vst.msk [vmem:[%s647] sm:$0xff] %vm707, %v1640
        $region88: #{tpu_custom_call.1} parent=79 // pred_fallthru
          _
        %s1642 = sand.u32 %s429, 1
        %s1643 = scalar_lea.sflag [#allocation4], %s1642
        %s1644 = sand.u32 %s429, 1
        %s1645 = smul.addr %s1644, 8
        %s1646 = scalar_lea.vmem [#allocation3], %s1645
        // Predicated region
        $region89: #{tpu_custom_call.1} parent=79 // pred_check
          %p1647 = pneg %p439
        $region90: #{tpu_custom_call.1} parent=79 // pred_check_branch
          %1649 = sbr.rel (%p1647) target = $region92
        $region91: #{tpu_custom_call.1} parent=79 // pred_region
          %1651 = vsyncadd %s1643, 0
          %s1652 = smul.addr %s33, 8
          %s1653 = scalar_lea.hbm %s15, %s1652
          %s1655 = sshll.u32 %s1646, 4
          %s1656 = int_to_ptr.vmem [resolvable:$true] %s1655
          %s1657 = sshll.u32 %s1653, 4
          %s1658 = int_to_ptr.hbm [resolvable:$true] %s1657
          %1660 = dma.vmem_to_hbm [thread:$0]  %s1656, 128, %s1658, %s1643
        $region92: #{tpu_custom_call.1} parent=79 // pred_fallthru
          _
      $region80: #{tpu_custom_call.1} parent=5 // pred_fallthru
        _
      %p1661 = scmp.le.s32.totalorder 2, %s24
      // Predicated region
      $region93: #{tpu_custom_call.1} parent=5 // pred_check
        %p1662 = pneg %p1661
      $region94: #{tpu_custom_call.1} parent=5 // pred_check_branch
        %1664 = sbr.rel (%p1662) target = $region96
      $region95: #{tpu_custom_call.1} parent=5 // pred_region
        %s1665 = ssub.s32 %s24, 2
        // Predicated region
        $region97: #{tpu_custom_call.1} parent=95 // pred_check
          %p1666 = pneg %p445
        $region98: #{tpu_custom_call.1} parent=95 // pred_check_branch
          %1668 = sbr.rel (%p1666) target = $region100
        $region99: #{tpu_custom_call.1} parent=95 // pred_region
          %s1669 = sand.u32 %s430, 1
          %s1670 = scalar_lea.sflag [#allocation4], %s1669
          %s1671 = sand.u32 %s430, 1
          %s1672 = smul.addr %s1671, 8
          %s1673 = scalar_lea.vmem [#allocation3], %s1672
          %1675 = dma.done %s1670, 128
        $region100: #{tpu_custom_call.1} parent=95 // pred_fallthru
          _
      $region96: #{tpu_custom_call.1} parent=5 // pred_fallthru
        _
    $region6: #{tpu_custom_call.1} parent=1 // loop_footer
      %s28 = sadd.s32 1, %s24
    $region7: #{tpu_custom_call.1} parent=1 // loop_footer_branch
      %23 = sbr.rel target = $region3
    $region8: #{tpu_custom_call.1} parent=1 // loop_exit
      _
    %1676 = vsyncpa [#allocation4], 1
    %s1677 = scalar_lea.sflag [#allocation4], 1
    %1678 = vsyncpa %s1677, 1

</llo_original>
